<compile_context>
chip_gen: v5e
topology: v5e:2x2
jax: 0.10.0
libtpu: 0.0.40
codegen_flags: <defaults>
</compile_context>

<pallas_src>
import jax
import jax.numpy as jnp
import numpy as np
from jax.experimental import pallas as pl
from jax.experimental.pallas import tpu as pltpu

EPS = 1e-5


def prenorm_linear_kernel(x_ref, w_ref, b_ref, o_ref, xn_ref):
    # x_ref : (TM, D)   row tile (input dtype)
    # w_ref : (D, TN)   gamma-folded weight (bf16)
    # b_ref : (1, TN)   folded bias (f32)
    # o_ref : (TM, TN)  output tile
    # xn_ref: (TM, D)   VMEM scratch caching normalized rows (bf16)
    j = pl.program_id(1)

    @pl.when(j == 0)
    def _():
        # LayerNorm stats in f32 (once per row tile, reused for every j).
        x = x_ref[...].astype(jnp.float32)
        mean = jnp.mean(x, axis=-1, keepdims=True)
        xc = x - mean
        var = jnp.mean(xc * xc, axis=-1, keepdims=True)   # biased var (nn.LayerNorm)
        xn = xc * jax.lax.rsqrt(var + EPS)
        xn_ref[...] = xn.astype(xn_ref.dtype)

    out = jnp.dot(xn_ref[...], w_ref[...], preferred_element_type=jnp.float32)
    out = out + b_ref[...].astype(jnp.float32)
    o_ref[...] = out.astype(o_ref.dtype)


def _vmem_budget_bytes():
    """Per-chip usable VMEM budget (leaves headroom below physical)."""
    try:
        phys = int(pltpu.get_tpu_info().vmem_capacity_bytes)
    except Exception:
        phys = 64 << 20          # conservative default (v7x per-TC physical)
    return max(16 << 20, (phys * 3) // 4)


def _choose_tiles(D, dout_p, x_item, out_item, budget, tm_req, tn_req):
    """Pick (tm, tn) so the working set fits `budget` bytes of VMEM."""

    def need(tm, tn):
        return (2 * tm * D * x_item        # x tile, double-buffered
                + 2 * tm * tn * out_item   # out tile, double-buffered
                + tm * D * 2               # xn scratch (bf16)
                + 2 * D * tn * 2           # folded weight (bf16, conservative 2x)
                + 2 * tn * 4)              # folded bias

    if tm_req is not None and tn_req is not None:
        return tm_req, tn_req

    tm_cands = [tm_req] if tm_req is not None else [512, 256, 128]
    # tn candidates: resident first, then multiples of 128 dividing dout_p.
    tn_divisors = [t for t in range(dout_p, 127, -128)
                   if dout_p % t == 0 and t % 128 == 0]
    if not tn_divisors:
        tn_divisors = [dout_p]
    if tn_req is not None:
        tn_divisors = [tn_req]

    # 1) Prefer a resident weight (tn = dout_p) with the largest row tile.
    for tm in tm_cands:
        if need(tm, dout_p) <= budget and (tn_req is None or tn_req == dout_p):
            return tm, dout_p
    # 2) Otherwise the largest MXU-aligned tn that divides dout_p and fits.
    for tm in tm_cands:
        for tn in tn_divisors:
            if need(tm, tn) <= budget:
                return tm, tn
    # 3) Last resort (tiny budget): minimal aligned tiles.
    return 128, tn_divisors[-1]


def prenorm_linear(x, gamma, beta, w, wb, *, tm=None, tn=None,
                   matmul_dtype=jnp.bfloat16):
    """x: (B, S, D); returns fn(LayerNorm(x)) with fn = Linear(D, DOUT)."""
    B, S, D = x.shape
    DOUT = w.shape[1]
    rows = B * S

    # Pad DOUT to a multiple of 128 so tn stays MXU/lane aligned.
    dout_p = ((DOUT + 127) // 128) * 128

    # Fold LayerNorm affine (gamma, beta) into the linear layer (one-time XLA).
    wf = w.astype(jnp.float32)
    if dout_p != DOUT:
        wf = jnp.pad(wf, ((0, 0), (0, dout_p - DOUT)))
    wbf = wb.astype(jnp.float32)
    if dout_p != DOUT:
        wbf = jnp.pad(wbf, (0, dout_p - DOUT))
    w_fold = (gamma.astype(jnp.float32)[:, None] * wf).astype(matmul_dtype)
    b_fold = (beta.astype(jnp.float32) @ wf + wbf).reshape(1, dout_p)
    b_fold = b_fold.astype(jnp.float32)

    x_item = jnp.dtype(x.dtype).itemsize
    out_item = jnp.dtype(x.dtype).itemsize
    budget = _vmem_budget_bytes()
    tm, tn = _choose_tiles(D, dout_p, x_item, out_item, budget, tm, tn)

    # Pad rows to a multiple of tm (padded rows give bias-valued outputs that
    # are sliced off below; eps keeps the all-zero rows finite).
    rows_p = ((rows + tm - 1) // tm) * tm
    x2 = x.reshape(rows, D)
    if rows_p != rows:
        x2 = jnp.pad(x2, ((0, rows_p - rows), (0, 0)))

    grid = (rows_p // tm, dout_p // tn)
    weight_resident = (tn == dout_p)

    cost = pl.CostEstimate(
        flops=int(2 * rows_p * D * dout_p),
        transcendentals=0,
        bytes_accessed=int(rows_p * D * x_item
                           + D * dout_p * 2 * (1 if weight_resident else grid[0])
                           + rows_p * dout_p * out_item),
    )

    out = pl.pallas_call(
        prenorm_linear_kernel,
        out_shape=jax.ShapeDtypeStruct((rows_p, dout_p), x.dtype),
        grid=grid,
        in_specs=[
            pl.BlockSpec((tm, D), lambda i, j: (i, 0)),    # x row tile
            pl.BlockSpec((D, tn), lambda i, j: (0, j)),    # folded weight tile
            pl.BlockSpec((1, tn), lambda i, j: (0, j)),    # folded bias tile
        ],
        out_specs=pl.BlockSpec((tm, tn), lambda i, j: (i, j)),
        scratch_shapes=[pltpu.VMEM((tm, D), matmul_dtype)],   # cached LN(x)
        compiler_params=pltpu.CompilerParams(
            # row axis parallel (v7x 2-TC sharding); j is a carried axis
            # because the xn scratch is filled at j == 0 and reused.
            dimension_semantics=("parallel", "arbitrary"),
            vmem_limit_bytes=int(budget),
        ),
        cost_estimate=cost,
    )(x2, w_fold, b_fold)

    out = out[:rows, :DOUT]
    return out.reshape(B, S, DOUT)


def prenorm_linear_ref(x, gamma, beta, w, wb):
    # Pure-JAX reference matching PyTorch: Linear(LayerNorm(x)), all f32.
    xf = x.astype(jnp.float32)
    mean = jnp.mean(xf, axis=-1, keepdims=True)
    var = jnp.mean((xf - mean) ** 2, axis=-1, keepdims=True)
    xn = (xf - mean) / jnp.sqrt(var + EPS)
    y = xn * gamma.astype(jnp.float32) + beta.astype(jnp.float32)
    return (y @ w.astype(jnp.float32) + wb.astype(jnp.float32)).astype(x.dtype)


if __name__ == "__main__":
    # Small but lane-aligned shapes: rows = B*S = 512, D = DOUT = 128.
    B, S, D, DOUT = 2, 256, 128, 128

    key = jax.random.PRNGKey(0)
    kx, kg, kb, kw, kwb = jax.random.split(key, 5)

    x = jax.random.normal(kx, (B, S, D), dtype=jnp.float32)
    # Synthetic params matching nn.LayerNorm(dim) + nn.Linear(dim, dim_out).
    gamma = jnp.ones((D,), jnp.float32) + 0.01 * jax.random.normal(kg, (D,), jnp.float32)
    beta = 0.01 * jax.random.normal(kb, (D,), jnp.float32)
    w = 0.02 * jax.random.normal(kw, (D, DOUT), jnp.float32)
    wb = 0.01 * jax.random.normal(kwb, (DOUT,), jnp.float32)

    out = prenorm_linear(x, gamma, beta, w, wb)
    out = jax.block_until_ready(out)

    ref = prenorm_linear_ref(x, gamma, beta, w, wb)
    # bf16 MXU operands with f32 accumulation -> loosened tolerance vs all-f32.
    np.testing.assert_allclose(np.asarray(out), np.asarray(ref),
                               rtol=2e-2, atol=2e-2)

    print("KERNEL_OK")
</pallas_src>

<mosaic_0001>
module attributes {stable_mosaic.version = 11 : i64} {
  func.func @prenorm_linear_kernel(%arg0: i32, %arg1: i32, %arg2: memref<512x128xf32, #tpu.memory_space<vmem>>, %arg3: memref<128x128xbf16, #tpu.memory_space<vmem>>, %arg4: memref<1x128xf32, #tpu.memory_space<vmem>>, %arg5: memref<512x128xf32, #tpu.memory_space<vmem>>, %arg6: memref<512x128xbf16, #tpu.memory_space<vmem>>) attributes {dimension_semantics = [#tpu.dimension_semantics<parallel>, #tpu.dimension_semantics<arbitrary>], iteration_bounds = array<i64: 1, 1>, scalar_prefetch = 0 : i64, scratch_operands = 1 : i64, tpu.core_type = #tpu.core_type<tc>, window_params = [{transform_indices = @transform_0, window_bounds = array<i64: 512, 128>}, {transform_indices = @transform_1, window_bounds = array<i64: 128, 128>}, {transform_indices = @transform_2, window_bounds = array<i64: 1, 128>}, {transform_indices = @transform_3, window_bounds = array<i64: 512, 128>}]} {
    %c0_i32 = arith.constant 0 : i32
    %0 = arith.cmpi eq, %arg1, %c0_i32 : i32
    %1 = arith.extui %0 : i1 to i32
    %c0_i32_0 = arith.constant 0 : i32
    %2 = arith.cmpi ne, %1, %c0_i32_0 : i32
    scf.if %2 {
      %c0_8 = arith.constant 0 : index
      %c0_9 = arith.constant 0 : index
      %10 = vector.load %arg2[%c0_8, %c0_9] : memref<512x128xf32, #tpu.memory_space<vmem>>, vector<512x128xf32>
      %cst_10 = arith.constant dense<0.000000e+00> : vector<512xf32>
      %11 = vector.multi_reduction <add>, %10, %cst_10 [1] : vector<512x128xf32> to vector<512xf32>
      %12 = vector.shape_cast %11 : vector<512xf32> to vector<512x1xf32>
      %cst_11 = arith.constant 1.280000e+02 : f32
      %13 = vector.broadcast %cst_11 : f32 to vector<512x1xf32>
      %14 = arith.divf %12, %13 : vector<512x1xf32>
      %15 = vector.broadcast %14 : vector<512x1xf32> to vector<512x128xf32>
      %16 = arith.subf %10, %15 : vector<512x128xf32>
      %17 = arith.mulf %16, %16 : vector<512x128xf32>
      %cst_12 = arith.constant dense<0.000000e+00> : vector<512xf32>
      %18 = vector.multi_reduction <add>, %17, %cst_12 [1] : vector<512x128xf32> to vector<512xf32>
      %19 = vector.shape_cast %18 : vector<512xf32> to vector<512x1xf32>
      %cst_13 = arith.constant 1.280000e+02 : f32
      %20 = vector.broadcast %cst_13 : f32 to vector<512x1xf32>
      %21 = arith.divf %19, %20 : vector<512x1xf32>
      %cst_14 = arith.constant 9.99999974E-6 : f32
      %22 = vector.broadcast %cst_14 : f32 to vector<512x1xf32>
      %23 = arith.addf %21, %22 : vector<512x1xf32>
      %24 = math.rsqrt %23 : vector<512x1xf32>
      %25 = vector.broadcast %24 : vector<512x1xf32> to vector<512x128xf32>
      %26 = arith.mulf %16, %25 : vector<512x128xf32>
      %27 = arith.truncf %26 : vector<512x128xf32> to vector<512x128xbf16>
      %c0_15 = arith.constant 0 : index
      %c0_16 = arith.constant 0 : index
      %28 = vector.load %arg6[%c0_15, %c0_16] : memref<512x128xbf16, #tpu.memory_space<vmem>>, vector<512x128xbf16>
      tpu.vector_store %arg6[%c0_15, %c0_16], %27 {strides = array<i32>} : memref<512x128xbf16, #tpu.memory_space<vmem>>, vector<512x128xbf16>,
    } else {
    }
    %c0 = arith.constant 0 : index
    %c0_1 = arith.constant 0 : index
    %3 = vector.load %arg6[%c0, %c0_1] : memref<512x128xbf16, #tpu.memory_space<vmem>>, vector<512x128xbf16>
    %c0_2 = arith.constant 0 : index
    %c0_3 = arith.constant 0 : index
    %4 = vector.load %arg3[%c0_2, %c0_3] : memref<128x128xbf16, #tpu.memory_space<vmem>>, vector<128x128xbf16>
    %cst = arith.constant dense<0.000000e+00> : vector<512x128xf32>
    %5 = tpu.matmul %3, %4, %cst {dimension_numbers = #tpu.dot_dimension_numbers<[1], [0], [0], [1], [0, 0, 1, 1], [], []>} : vector<512x128xbf16>, vector<128x128xbf16>, vector<512x128xf32> -> vector<512x128xf32>
    %c0_4 = arith.constant 0 : index
    %c0_5 = arith.constant 0 : index
    %6 = vector.load %arg4[%c0_4, %c0_5] : memref<1x128xf32, #tpu.memory_space<vmem>>, vector<1x128xf32>
    %7 = vector.broadcast %6 : vector<1x128xf32> to vector<512x128xf32>
    %8 = arith.addf %5, %7 : vector<512x128xf32>
    %c0_6 = arith.constant 0 : index
    %c0_7 = arith.constant 0 : index
    %9 = vector.load %arg5[%c0_6, %c0_7] : memref<512x128xf32, #tpu.memory_space<vmem>>, vector<512x128xf32>
    tpu.vector_store %arg5[%c0_6, %c0_7], %8 {strides = array<i32>} : memref<512x128xf32, #tpu.memory_space<vmem>>, vector<512x128xf32>,
    return
  }
  func.func @transform_0(%arg0: i32, %arg1: i32) -> (i32, i32) {
    %c0_i32 = arith.constant 0 : i32
    %c0_i32_0 = arith.constant 0 : i32
    return %arg0, %c0_i32 : i32, i32
  }
  func.func @transform_1(%arg0: i32, %arg1: i32) -> (i32, i32) {
    %c0_i32 = arith.constant 0 : i32
    %c0_i32_0 = arith.constant 0 : i32
    return %c0_i32, %arg1 : i32, i32
  }
  func.func @transform_2(%arg0: i32, %arg1: i32) -> (i32, i32) {
    %c0_i32 = arith.constant 0 : i32
    %c0_i32_0 = arith.constant 0 : i32
    return %c0_i32, %arg1 : i32, i32
  }
  func.func @transform_3(%arg0: i32, %arg1: i32) -> (i32, i32) {
    %c0_i32 = arith.constant 0 : i32
    return %arg0, %arg1 : i32, i32
  }
}

</mosaic_0001>

<llo_original>
// kernel: tpu_custom_call.1
$region0: #{tpu_custom_call.1}
  #allocation0 [shape = 'u32[]', space=smem, size = 0x4, offset = 0x4, fixed_abs, tag = 'smem constant byte address 0x4 - core index']
  #allocation1 [shape = 'u32[72,128]{1,0:T(1,128)}', space=vmem, size = 0x9000, scoped, tag = 'internal scratch']
  #allocation2 [shape = 'bf16[512,128]{1,0:T(8,128)(2,1)}', space=vmem, size = 0x20000, scoped, tag = 'scratch operand']
  %s0 = inlined_call_operand.hbm [shape: f32[512,128], index: 0, kind: input, shape index: {}]
  %s1 = inlined_call_operand.hbm [shape: bf16[128,128], index: 1, kind: input, shape index: {}]
  %s2 = inlined_call_operand.vmem [shape: f32[1,128], index: 2, kind: input, shape index: {}]
  %s3 = inlined_call_operand.hbm [shape: f32[512,128], index: 3, kind: output, shape index: {}]
  %s4 = sld [smem:[#allocation0]]
  $region34: #{tpu_custom_call.1} parent=0
    _
  %s6 = ssub.s32 1, %s4
  %s7 = scalar_select 0, %s6, %s4
  $region1: #{tpu_custom_call.1} parent=0
    #allocation3 [shape = 'u8[262144]{0}', space=vmem, size = 0x40000, scoped, tag = 'input window, operand 0, single buffered']
    #allocation4 [shape = 's32[1]{0}', space=sflag, size = 0x4, scoped, tag = 'scoped memory for tpu_custom_call.1']
    #allocation5 [shape = 's32[1]{0}', space=sflag, size = 0x4, scoped, tag = 'scoped memory for tpu_custom_call.1']
    #allocation6 [shape = 'u8[32768]{0}', space=vmem, size = 0x8000, scoped, tag = 'input window, operand 1, single buffered']
    #allocation7 [shape = 's32[1]{0}', space=sflag, size = 0x4, scoped, tag = 'scoped memory for tpu_custom_call.1']
    #allocation8 [shape = 'u8[262144]{0}', space=vmem, size = 0x40000, scoped, tag = 'output window, operand 0, single buffered']
    %8 = vsyncpa [#allocation4], 0
    %9 = vsyncpa [#allocation7], 0
    %10 = vsyncpa [#allocation5], 0
    // Predicated region
    $region2: #{tpu_custom_call.1} parent=1 // pred_check
      _
    $region3: #{tpu_custom_call.1} parent=1 // pred_check_branch
      %12 = sbr.rel (0) target = $region5
    $region4: #{tpu_custom_call.1} parent=1 // pred_region
      %14 = vsyncadd [#allocation4], 0
      %s15 = sshll.u32 %s0, 4
      %s16 = int_to_ptr.hbm [resolvable:$true] %s15
      %s17 = sshll.u32 [#allocation3], 4
      %s18 = int_to_ptr.vmem [resolvable:$true] %s17
      %23 = dma.hbm_to_vmem [thread:$0]  %s16, 8192, %s18, [#allocation4], 128, 128, 8
    $region5: #{tpu_custom_call.1} parent=1 // pred_fallthru
      _
    // Predicated region
    $region6: #{tpu_custom_call.1} parent=1 // pred_check
      _
    $region7: #{tpu_custom_call.1} parent=1 // pred_check_branch
      %25 = sbr.rel (0) target = $region9
    $region8: #{tpu_custom_call.1} parent=1 // pred_region
      %27 = vsyncadd [#allocation7], 0
      %s28 = sshll.u32 %s1, 4
      %s29 = int_to_ptr.hbm [resolvable:$true] %s28
      %s30 = sshll.u32 [#allocation6], 4
      %s31 = int_to_ptr.vmem [resolvable:$true] %s30
      %36 = dma.hbm_to_vmem [thread:$0]  %s29, 1024, %s31, [#allocation7], 64, 64, 4
    $region9: #{tpu_custom_call.1} parent=1 // pred_fallthru
      _
    // Predicated region
    $region10: #{tpu_custom_call.1} parent=1 // pred_check
      _
    $region11: #{tpu_custom_call.1} parent=1 // pred_check_branch
      %38 = sbr.rel (0) target = $region13
    $region12: #{tpu_custom_call.1} parent=1 // pred_region
      _
    $region13: #{tpu_custom_call.1} parent=1 // pred_fallthru
      _
    // Predicated region
    $region14: #{tpu_custom_call.1} parent=1 // pred_check
      _
    $region15: #{tpu_custom_call.1} parent=1 // pred_check_branch
      %40 = sbr.rel (0) target = $region17
    $region16: #{tpu_custom_call.1} parent=1 // pred_region
      %42 = dma.done [#allocation4], 8192
    $region17: #{tpu_custom_call.1} parent=1 // pred_fallthru
      _
    // Predicated region
    $region18: #{tpu_custom_call.1} parent=1 // pred_check
      _
    $region19: #{tpu_custom_call.1} parent=1 // pred_check_branch
      %44 = sbr.rel (0) target = $region21
    $region20: #{tpu_custom_call.1} parent=1 // pred_region
      %46 = dma.done [#allocation7], 1024
    $region21: #{tpu_custom_call.1} parent=1 // pred_fallthru
      _
    %p47 = scmp.eq.s32.totalorder 0, 0
    // Predicated region
    $region22: #{tpu_custom_call.1} parent=1 // pred_check
      %p48 = pneg %p47
    $region23: #{tpu_custom_call.1} parent=1 // pred_check_branch
      %50 = sbr.rel (%p48) target = $region25
    $region24: #{tpu_custom_call.1} parent=1 // pred_region
      %v51 = vld [vmem:[#allocation3] sm:$0xff]
      %v52 = vld [vmem:[#allocation3 + $0x8] sm:$0xff]
      %v53 = vld [vmem:[#allocation3 + $0x10] sm:$0xff]
      %v54 = vld [vmem:[#allocation3 + $0x18] sm:$0xff]
      %v55 = vld [vmem:[#allocation3 + $0x20] sm:$0xff]
      %v56 = vld [vmem:[#allocation3 + $0x28] sm:$0xff]
      %v57 = vld [vmem:[#allocation3 + $0x30] sm:$0xff]
      %v58 = vld [vmem:[#allocation3 + $0x38] sm:$0xff]
      %v59 = vld [vmem:[#allocation3 + $0x40] sm:$0xff]
      %v60 = vld [vmem:[#allocation3 + $0x48] sm:$0xff]
      %v61 = vld [vmem:[#allocation3 + $0x50] sm:$0xff]
      %v62 = vld [vmem:[#allocation3 + $0x58] sm:$0xff]
      %v63 = vld [vmem:[#allocation3 + $0x60] sm:$0xff]
      %v64 = vld [vmem:[#allocation3 + $0x68] sm:$0xff]
      %v65 = vld [vmem:[#allocation3 + $0x70] sm:$0xff]
      %v66 = vld [vmem:[#allocation3 + $0x78] sm:$0xff]
      %v67 = vld [vmem:[#allocation3 + $0x80] sm:$0xff]
      %v68 = vld [vmem:[#allocation3 + $0x88] sm:$0xff]
      %v69 = vld [vmem:[#allocation3 + $0x90] sm:$0xff]
      %v70 = vld [vmem:[#allocation3 + $0x98] sm:$0xff]
      %v71 = vld [vmem:[#allocation3 + $0xa0] sm:$0xff]
      %v72 = vld [vmem:[#allocation3 + $0xa8] sm:$0xff]
      %v73 = vld [vmem:[#allocation3 + $0xb0] sm:$0xff]
      %v74 = vld [vmem:[#allocation3 + $0xb8] sm:$0xff]
      %v75 = vld [vmem:[#allocation3 + $0xc0] sm:$0xff]
      %v76 = vld [vmem:[#allocation3 + $0xc8] sm:$0xff]
      %v77 = vld [vmem:[#allocation3 + $0xd0] sm:$0xff]
      %v78 = vld [vmem:[#allocation3 + $0xd8] sm:$0xff]
      %v79 = vld [vmem:[#allocation3 + $0xe0] sm:$0xff]
      %v80 = vld [vmem:[#allocation3 + $0xe8] sm:$0xff]
      %v81 = vld [vmem:[#allocation3 + $0xf0] sm:$0xff]
      %v82 = vld [vmem:[#allocation3 + $0xf8] sm:$0xff]
      %v83 = vld [vmem:[#allocation3 + $0x100] sm:$0xff]
      %v84 = vld [vmem:[#allocation3 + $0x108] sm:$0xff]
      %v85 = vld [vmem:[#allocation3 + $0x110] sm:$0xff]
      %v86 = vld [vmem:[#allocation3 + $0x118] sm:$0xff]
      %v87 = vld [vmem:[#allocation3 + $0x120] sm:$0xff]
      %v88 = vld [vmem:[#allocation3 + $0x128] sm:$0xff]
      %v89 = vld [vmem:[#allocation3 + $0x130] sm:$0xff]
      %v90 = vld [vmem:[#allocation3 + $0x138] sm:$0xff]
      %v91 = vld [vmem:[#allocation3 + $0x140] sm:$0xff]
      %v92 = vld [vmem:[#allocation3 + $0x148] sm:$0xff]
      %v93 = vld [vmem:[#allocation3 + $0x150] sm:$0xff]
      %v94 = vld [vmem:[#allocation3 + $0x158] sm:$0xff]
      %v95 = vld [vmem:[#allocation3 + $0x160] sm:$0xff]
      %v96 = vld [vmem:[#allocation3 + $0x168] sm:$0xff]
      %v97 = vld [vmem:[#allocation3 + $0x170] sm:$0xff]
      %v98 = vld [vmem:[#allocation3 + $0x178] sm:$0xff]
      %v99 = vld [vmem:[#allocation3 + $0x180] sm:$0xff]
      %v100 = vld [vmem:[#allocation3 + $0x188] sm:$0xff]
      %v101 = vld [vmem:[#allocation3 + $0x190] sm:$0xff]
      %v102 = vld [vmem:[#allocation3 + $0x198] sm:$0xff]
      %v103 = vld [vmem:[#allocation3 + $0x1a0] sm:$0xff]
      %v104 = vld [vmem:[#allocation3 + $0x1a8] sm:$0xff]
      %v105 = vld [vmem:[#allocation3 + $0x1b0] sm:$0xff]
      %v106 = vld [vmem:[#allocation3 + $0x1b8] sm:$0xff]
      %v107 = vld [vmem:[#allocation3 + $0x1c0] sm:$0xff]
      %v108 = vld [vmem:[#allocation3 + $0x1c8] sm:$0xff]
      %v109 = vld [vmem:[#allocation3 + $0x1d0] sm:$0xff]
      %v110 = vld [vmem:[#allocation3 + $0x1d8] sm:$0xff]
      %v111 = vld [vmem:[#allocation3 + $0x1e0] sm:$0xff]
      %v112 = vld [vmem:[#allocation3 + $0x1e8] sm:$0xff]
      %v113 = vld [vmem:[#allocation3 + $0x1f0] sm:$0xff]
      %v114 = vld [vmem:[#allocation3 + $0x1f8] sm:$0xff]
      %115 = vadd.xlane.f32.xlu0 %v51
      %v116 = vpop.xlane.xlu0 %115
      %117 = vadd.xlane.f32.xlu0 %v52
      %v118 = vpop.xlane.xlu0 %117
      %119 = vadd.xlane.f32.xlu0 %v53
      %v120 = vpop.xlane.xlu0 %119
      %121 = vadd.xlane.f32.xlu0 %v54
      %v122 = vpop.xlane.xlu0 %121
      %123 = vadd.xlane.f32.xlu0 %v55
      %v124 = vpop.xlane.xlu0 %123
      %125 = vadd.xlane.f32.xlu0 %v56
      %v126 = vpop.xlane.xlu0 %125
      %127 = vadd.xlane.f32.xlu0 %v57
      %v128 = vpop.xlane.xlu0 %127
      %129 = vadd.xlane.f32.xlu0 %v58
      %v130 = vpop.xlane.xlu0 %129
      %131 = vadd.xlane.f32.xlu0 %v59
      %v132 = vpop.xlane.xlu0 %131
      %133 = vadd.xlane.f32.xlu0 %v60
      %v134 = vpop.xlane.xlu0 %133
      %135 = vadd.xlane.f32.xlu0 %v61
      %v136 = vpop.xlane.xlu0 %135
      %137 = vadd.xlane.f32.xlu0 %v62
      %v138 = vpop.xlane.xlu0 %137
      %139 = vadd.xlane.f32.xlu0 %v63
      %v140 = vpop.xlane.xlu0 %139
      %141 = vadd.xlane.f32.xlu0 %v64
      %v142 = vpop.xlane.xlu0 %141
      %143 = vadd.xlane.f32.xlu0 %v65
      %v144 = vpop.xlane.xlu0 %143
      %145 = vadd.xlane.f32.xlu0 %v66
      %v146 = vpop.xlane.xlu0 %145
      %147 = vadd.xlane.f32.xlu0 %v67
      %v148 = vpop.xlane.xlu0 %147
      %149 = vadd.xlane.f32.xlu0 %v68
      %v150 = vpop.xlane.xlu0 %149
      %151 = vadd.xlane.f32.xlu0 %v69
      %v152 = vpop.xlane.xlu0 %151
      %153 = vadd.xlane.f32.xlu0 %v70
      %v154 = vpop.xlane.xlu0 %153
      %155 = vadd.xlane.f32.xlu0 %v71
      %v156 = vpop.xlane.xlu0 %155
      %157 = vadd.xlane.f32.xlu0 %v72
      %v158 = vpop.xlane.xlu0 %157
      %159 = vadd.xlane.f32.xlu0 %v73
      %v160 = vpop.xlane.xlu0 %159
      %161 = vadd.xlane.f32.xlu0 %v74
      %v162 = vpop.xlane.xlu0 %161
      %163 = vadd.xlane.f32.xlu0 %v75
      %v164 = vpop.xlane.xlu0 %163
      %165 = vadd.xlane.f32.xlu0 %v76
      %v166 = vpop.xlane.xlu0 %165
      %167 = vadd.xlane.f32.xlu0 %v77
      %v168 = vpop.xlane.xlu0 %167
      %169 = vadd.xlane.f32.xlu0 %v78
      %v170 = vpop.xlane.xlu0 %169
      %171 = vadd.xlane.f32.xlu0 %v79
      %v172 = vpop.xlane.xlu0 %171
      %173 = vadd.xlane.f32.xlu0 %v80
      %v174 = vpop.xlane.xlu0 %173
      %175 = vadd.xlane.f32.xlu0 %v81
      %v176 = vpop.xlane.xlu0 %175
      %177 = vadd.xlane.f32.xlu0 %v82
      %v178 = vpop.xlane.xlu0 %177
      %179 = vadd.xlane.f32.xlu0 %v83
      %v180 = vpop.xlane.xlu0 %179
      %181 = vadd.xlane.f32.xlu0 %v84
      %v182 = vpop.xlane.xlu0 %181
      %183 = vadd.xlane.f32.xlu0 %v85
      %v184 = vpop.xlane.xlu0 %183
      %185 = vadd.xlane.f32.xlu0 %v86
      %v186 = vpop.xlane.xlu0 %185
      %187 = vadd.xlane.f32.xlu0 %v87
      %v188 = vpop.xlane.xlu0 %187
      %189 = vadd.xlane.f32.xlu0 %v88
      %v190 = vpop.xlane.xlu0 %189
      %191 = vadd.xlane.f32.xlu0 %v89
      %v192 = vpop.xlane.xlu0 %191
      %193 = vadd.xlane.f32.xlu0 %v90
      %v194 = vpop.xlane.xlu0 %193
      %195 = vadd.xlane.f32.xlu0 %v91
      %v196 = vpop.xlane.xlu0 %195
      %197 = vadd.xlane.f32.xlu0 %v92
      %v198 = vpop.xlane.xlu0 %197
      %199 = vadd.xlane.f32.xlu0 %v93
      %v200 = vpop.xlane.xlu0 %199
      %201 = vadd.xlane.f32.xlu0 %v94
      %v202 = vpop.xlane.xlu0 %201
      %203 = vadd.xlane.f32.xlu0 %v95
      %v204 = vpop.xlane.xlu0 %203
      %205 = vadd.xlane.f32.xlu0 %v96
      %v206 = vpop.xlane.xlu0 %205
      %207 = vadd.xlane.f32.xlu0 %v97
      %v208 = vpop.xlane.xlu0 %207
      %209 = vadd.xlane.f32.xlu0 %v98
      %v210 = vpop.xlane.xlu0 %209
      %211 = vadd.xlane.f32.xlu0 %v99
      %v212 = vpop.xlane.xlu0 %211
      %213 = vadd.xlane.f32.xlu0 %v100
      %v214 = vpop.xlane.xlu0 %213
      %215 = vadd.xlane.f32.xlu0 %v101
      %v216 = vpop.xlane.xlu0 %215
      %217 = vadd.xlane.f32.xlu0 %v102
      %v218 = vpop.xlane.xlu0 %217
      %219 = vadd.xlane.f32.xlu0 %v103
      %v220 = vpop.xlane.xlu0 %219
      %221 = vadd.xlane.f32.xlu0 %v104
      %v222 = vpop.xlane.xlu0 %221
      %223 = vadd.xlane.f32.xlu0 %v105
      %v224 = vpop.xlane.xlu0 %223
      %225 = vadd.xlane.f32.xlu0 %v106
      %v226 = vpop.xlane.xlu0 %225
      %227 = vadd.xlane.f32.xlu0 %v107
      %v228 = vpop.xlane.xlu0 %227
      %229 = vadd.xlane.f32.xlu0 %v108
      %v230 = vpop.xlane.xlu0 %229
      %231 = vadd.xlane.f32.xlu0 %v109
      %v232 = vpop.xlane.xlu0 %231
      %233 = vadd.xlane.f32.xlu0 %v110
      %v234 = vpop.xlane.xlu0 %233
      %235 = vadd.xlane.f32.xlu0 %v111
      %v236 = vpop.xlane.xlu0 %235
      %237 = vadd.xlane.f32.xlu0 %v112
      %v238 = vpop.xlane.xlu0 %237
      %239 = vadd.xlane.f32.xlu0 %v113
      %v240 = vpop.xlane.xlu0 %239
      %241 = vadd.xlane.f32.xlu0 %v114
      %v242 = vpop.xlane.xlu0 %241
      %v243 = vrcp.pop 128.0
      %v244 = vmul.f32 128.0, %v243
      %v245 = vsub.f32 1.0, %v244
      %v246 = vmul.f32 %v243, %v245
      %v247 = vadd.f32 %v243, %v246
      %vm248 = vweird.f32 %v243
      %v249 = vsel %vm248, %v243, %v247
      %v250 = vmul.f32 %v116, %v249
      %v251 = vmul.f32 %v118, %v249
      %v252 = vmul.f32 %v120, %v249
      %v253 = vmul.f32 %v122, %v249
      %v254 = vmul.f32 %v124, %v249
      %v255 = vmul.f32 %v126, %v249
      %v256 = vmul.f32 %v128, %v249
      %v257 = vmul.f32 %v130, %v249
      %v258 = vmul.f32 %v132, %v249
      %v259 = vmul.f32 %v134, %v249
      %v260 = vmul.f32 %v136, %v249
      %v261 = vmul.f32 %v138, %v249
      %v262 = vmul.f32 %v140, %v249
      %v263 = vmul.f32 %v142, %v249
      %v264 = vmul.f32 %v144, %v249
      %v265 = vmul.f32 %v146, %v249
      %v266 = vmul.f32 %v148, %v249
      %v267 = vmul.f32 %v150, %v249
      %v268 = vmul.f32 %v152, %v249
      %v269 = vmul.f32 %v154, %v249
      %v270 = vmul.f32 %v156, %v249
      %v271 = vmul.f32 %v158, %v249
      %v272 = vmul.f32 %v160, %v249
      %v273 = vmul.f32 %v162, %v249
      %v274 = vmul.f32 %v164, %v249
      %v275 = vmul.f32 %v166, %v249
      %v276 = vmul.f32 %v168, %v249
      %v277 = vmul.f32 %v170, %v249
      %v278 = vmul.f32 %v172, %v249
      %v279 = vmul.f32 %v174, %v249
      %v280 = vmul.f32 %v176, %v249
      %v281 = vmul.f32 %v178, %v249
      %v282 = vmul.f32 %v180, %v249
      %v283 = vmul.f32 %v182, %v249
      %v284 = vmul.f32 %v184, %v249
      %v285 = vmul.f32 %v186, %v249
      %v286 = vmul.f32 %v188, %v249
      %v287 = vmul.f32 %v190, %v249
      %v288 = vmul.f32 %v192, %v249
      %v289 = vmul.f32 %v194, %v249
      %v290 = vmul.f32 %v196, %v249
      %v291 = vmul.f32 %v198, %v249
      %v292 = vmul.f32 %v200, %v249
      %v293 = vmul.f32 %v202, %v249
      %v294 = vmul.f32 %v204, %v249
      %v295 = vmul.f32 %v206, %v249
      %v296 = vmul.f32 %v208, %v249
      %v297 = vmul.f32 %v210, %v249
      %v298 = vmul.f32 %v212, %v249
      %v299 = vmul.f32 %v214, %v249
      %v300 = vmul.f32 %v216, %v249
      %v301 = vmul.f32 %v218, %v249
      %v302 = vmul.f32 %v220, %v249
      %v303 = vmul.f32 %v222, %v249
      %v304 = vmul.f32 %v224, %v249
      %v305 = vmul.f32 %v226, %v249
      %v306 = vmul.f32 %v228, %v249
      %v307 = vmul.f32 %v230, %v249
      %v308 = vmul.f32 %v232, %v249
      %v309 = vmul.f32 %v234, %v249
      %v310 = vmul.f32 %v236, %v249
      %v311 = vmul.f32 %v238, %v249
      %v312 = vmul.f32 %v240, %v249
      %v313 = vmul.f32 %v242, %v249
      %v314 = vsub.f32 %v51, %v250
      %v315 = vsub.f32 %v52, %v251
      %v316 = vsub.f32 %v53, %v252
      %v317 = vsub.f32 %v54, %v253
      %v318 = vsub.f32 %v55, %v254
      %v319 = vsub.f32 %v56, %v255
      %v320 = vsub.f32 %v57, %v256
      %v321 = vsub.f32 %v58, %v257
      %v322 = vsub.f32 %v59, %v258
      %v323 = vsub.f32 %v60, %v259
      %v324 = vsub.f32 %v61, %v260
      %v325 = vsub.f32 %v62, %v261
      %v326 = vsub.f32 %v63, %v262
      %v327 = vsub.f32 %v64, %v263
      %v328 = vsub.f32 %v65, %v264
      %v329 = vsub.f32 %v66, %v265
      %v330 = vsub.f32 %v67, %v266
      %v331 = vsub.f32 %v68, %v267
      %v332 = vsub.f32 %v69, %v268
      %v333 = vsub.f32 %v70, %v269
      %v334 = vsub.f32 %v71, %v270
      %v335 = vsub.f32 %v72, %v271
      %v336 = vsub.f32 %v73, %v272
      %v337 = vsub.f32 %v74, %v273
      %v338 = vsub.f32 %v75, %v274
      %v339 = vsub.f32 %v76, %v275
      %v340 = vsub.f32 %v77, %v276
      %v341 = vsub.f32 %v78, %v277
      %v342 = vsub.f32 %v79, %v278
      %v343 = vsub.f32 %v80, %v279
      %v344 = vsub.f32 %v81, %v280
      %v345 = vsub.f32 %v82, %v281
      %v346 = vsub.f32 %v83, %v282
      %v347 = vsub.f32 %v84, %v283
      %v348 = vsub.f32 %v85, %v284
      %v349 = vsub.f32 %v86, %v285
      %v350 = vsub.f32 %v87, %v286
      %v351 = vsub.f32 %v88, %v287
      %v352 = vsub.f32 %v89, %v288
      %v353 = vsub.f32 %v90, %v289
      %v354 = vsub.f32 %v91, %v290
      %v355 = vsub.f32 %v92, %v291
      %v356 = vsub.f32 %v93, %v292
      %v357 = vsub.f32 %v94, %v293
      %v358 = vsub.f32 %v95, %v294
      %v359 = vsub.f32 %v96, %v295
      %v360 = vsub.f32 %v97, %v296
      %v361 = vsub.f32 %v98, %v297
      %v362 = vsub.f32 %v99, %v298
      %v363 = vsub.f32 %v100, %v299
      %v364 = vsub.f32 %v101, %v300
      %v365 = vsub.f32 %v102, %v301
      %v366 = vsub.f32 %v103, %v302
      %v367 = vsub.f32 %v104, %v303
      %v368 = vsub.f32 %v105, %v304
      %v369 = vsub.f32 %v106, %v305
      %v370 = vsub.f32 %v107, %v306
      %v371 = vsub.f32 %v108, %v307
      %v372 = vsub.f32 %v109, %v308
      %v373 = vsub.f32 %v110, %v309
      %v374 = vsub.f32 %v111, %v310
      %v375 = vsub.f32 %v112, %v311
      %v376 = vsub.f32 %v113, %v312
      %v377 = vsub.f32 %v114, %v313
      %v378 = vmul.f32 %v314, %v314
      %v379 = vmul.f32 %v315, %v315
      %v380 = vmul.f32 %v316, %v316
      %v381 = vmul.f32 %v317, %v317
      %v382 = vmul.f32 %v318, %v318
      %v383 = vmul.f32 %v319, %v319
      %v384 = vmul.f32 %v320, %v320
      %v385 = vmul.f32 %v321, %v321
      %v386 = vmul.f32 %v322, %v322
      %v387 = vmul.f32 %v323, %v323
      %v388 = vmul.f32 %v324, %v324
      %v389 = vmul.f32 %v325, %v325
      %v390 = vmul.f32 %v326, %v326
      %v391 = vmul.f32 %v327, %v327
      %v392 = vmul.f32 %v328, %v328
      %v393 = vmul.f32 %v329, %v329
      %v394 = vmul.f32 %v330, %v330
      %v395 = vmul.f32 %v331, %v331
      %v396 = vmul.f32 %v332, %v332
      %v397 = vmul.f32 %v333, %v333
      %v398 = vmul.f32 %v334, %v334
      %v399 = vmul.f32 %v335, %v335
      %v400 = vmul.f32 %v336, %v336
      %v401 = vmul.f32 %v337, %v337
      %v402 = vmul.f32 %v338, %v338
      %v403 = vmul.f32 %v339, %v339
      %v404 = vmul.f32 %v340, %v340
      %v405 = vmul.f32 %v341, %v341
      %v406 = vmul.f32 %v342, %v342
      %v407 = vmul.f32 %v343, %v343
      %v408 = vmul.f32 %v344, %v344
      %v409 = vmul.f32 %v345, %v345
      %v410 = vmul.f32 %v346, %v346
      %v411 = vmul.f32 %v347, %v347
      %v412 = vmul.f32 %v348, %v348
      %v413 = vmul.f32 %v349, %v349
      %v414 = vmul.f32 %v350, %v350
      %v415 = vmul.f32 %v351, %v351
      %v416 = vmul.f32 %v352, %v352
      %v417 = vmul.f32 %v353, %v353
      %v418 = vmul.f32 %v354, %v354
      %v419 = vmul.f32 %v355, %v355
      %v420 = vmul.f32 %v356, %v356
      %v421 = vmul.f32 %v357, %v357
      %v422 = vmul.f32 %v358, %v358
      %v423 = vmul.f32 %v359, %v359
      %v424 = vmul.f32 %v360, %v360
      %v425 = vmul.f32 %v361, %v361
      %v426 = vmul.f32 %v362, %v362
      %v427 = vmul.f32 %v363, %v363
      %v428 = vmul.f32 %v364, %v364
      %v429 = vmul.f32 %v365, %v365
      %v430 = vmul.f32 %v366, %v366
      %v431 = vmul.f32 %v367, %v367
      %v432 = vmul.f32 %v368, %v368
      %v433 = vmul.f32 %v369, %v369
      %v434 = vmul.f32 %v370, %v370
      %v435 = vmul.f32 %v371, %v371
      %v436 = vmul.f32 %v372, %v372
      %v437 = vmul.f32 %v373, %v373
      %v438 = vmul.f32 %v374, %v374
      %v439 = vmul.f32 %v375, %v375
      %v440 = vmul.f32 %v376, %v376
      %v441 = vmul.f32 %v377, %v377
      %442 = vadd.xlane.f32.xlu0 %v378
      %v443 = vpop.xlane.xlu0 %442
      %444 = vadd.xlane.f32.xlu0 %v379
      %v445 = vpop.xlane.xlu0 %444
      %446 = vadd.xlane.f32.xlu0 %v380
      %v447 = vpop.xlane.xlu0 %446
      %448 = vadd.xlane.f32.xlu0 %v381
      %v449 = vpop.xlane.xlu0 %448
      %450 = vadd.xlane.f32.xlu0 %v382
      %v451 = vpop.xlane.xlu0 %450
      %452 = vadd.xlane.f32.xlu0 %v383
      %v453 = vpop.xlane.xlu0 %452
      %454 = vadd.xlane.f32.xlu0 %v384
      %v455 = vpop.xlane.xlu0 %454
      %456 = vadd.xlane.f32.xlu0 %v385
      %v457 = vpop.xlane.xlu0 %456
      %458 = vadd.xlane.f32.xlu0 %v386
      %v459 = vpop.xlane.xlu0 %458
      %460 = vadd.xlane.f32.xlu0 %v387
      %v461 = vpop.xlane.xlu0 %460
      %462 = vadd.xlane.f32.xlu0 %v388
      %v463 = vpop.xlane.xlu0 %462
      %464 = vadd.xlane.f32.xlu0 %v389
      %v465 = vpop.xlane.xlu0 %464
      %466 = vadd.xlane.f32.xlu0 %v390
      %v467 = vpop.xlane.xlu0 %466
      %468 = vadd.xlane.f32.xlu0 %v391
      %v469 = vpop.xlane.xlu0 %468
      %470 = vadd.xlane.f32.xlu0 %v392
      %v471 = vpop.xlane.xlu0 %470
      %472 = vadd.xlane.f32.xlu0 %v393
      %v473 = vpop.xlane.xlu0 %472
      %474 = vadd.xlane.f32.xlu0 %v394
      %v475 = vpop.xlane.xlu0 %474
      %476 = vadd.xlane.f32.xlu0 %v395
      %v477 = vpop.xlane.xlu0 %476
      %478 = vadd.xlane.f32.xlu0 %v396
      %v479 = vpop.xlane.xlu0 %478
      %480 = vadd.xlane.f32.xlu0 %v397
      %v481 = vpop.xlane.xlu0 %480
      %482 = vadd.xlane.f32.xlu0 %v398
      %v483 = vpop.xlane.xlu0 %482
      %484 = vadd.xlane.f32.xlu0 %v399
      %v485 = vpop.xlane.xlu0 %484
      %486 = vadd.xlane.f32.xlu0 %v400
      %v487 = vpop.xlane.xlu0 %486
      %488 = vadd.xlane.f32.xlu0 %v401
      %v489 = vpop.xlane.xlu0 %488
      %490 = vadd.xlane.f32.xlu0 %v402
      %v491 = vpop.xlane.xlu0 %490
      %492 = vadd.xlane.f32.xlu0 %v403
      %v493 = vpop.xlane.xlu0 %492
      %494 = vadd.xlane.f32.xlu0 %v404
      %v495 = vpop.xlane.xlu0 %494
      %496 = vadd.xlane.f32.xlu0 %v405
      %v497 = vpop.xlane.xlu0 %496
      %498 = vadd.xlane.f32.xlu0 %v406
      %v499 = vpop.xlane.xlu0 %498
      %500 = vadd.xlane.f32.xlu0 %v407
      %v501 = vpop.xlane.xlu0 %500
      %502 = vadd.xlane.f32.xlu0 %v408
      %v503 = vpop.xlane.xlu0 %502
      %504 = vadd.xlane.f32.xlu0 %v409
      %v505 = vpop.xlane.xlu0 %504
      %506 = vadd.xlane.f32.xlu0 %v410
      %v507 = vpop.xlane.xlu0 %506
      %508 = vadd.xlane.f32.xlu0 %v411
      %v509 = vpop.xlane.xlu0 %508
      %510 = vadd.xlane.f32.xlu0 %v412
      %v511 = vpop.xlane.xlu0 %510
      %512 = vadd.xlane.f32.xlu0 %v413
      %v513 = vpop.xlane.xlu0 %512
      %514 = vadd.xlane.f32.xlu0 %v414
      %v515 = vpop.xlane.xlu0 %514
      %516 = vadd.xlane.f32.xlu0 %v415
      %v517 = vpop.xlane.xlu0 %516
      %518 = vadd.xlane.f32.xlu0 %v416
      %v519 = vpop.xlane.xlu0 %518
      %520 = vadd.xlane.f32.xlu0 %v417
      %v521 = vpop.xlane.xlu0 %520
      %522 = vadd.xlane.f32.xlu0 %v418
      %v523 = vpop.xlane.xlu0 %522
      %524 = vadd.xlane.f32.xlu0 %v419
      %v525 = vpop.xlane.xlu0 %524
      %526 = vadd.xlane.f32.xlu0 %v420
      %v527 = vpop.xlane.xlu0 %526
      %528 = vadd.xlane.f32.xlu0 %v421
      %v529 = vpop.xlane.xlu0 %528
      %530 = vadd.xlane.f32.xlu0 %v422
      %v531 = vpop.xlane.xlu0 %530
      %532 = vadd.xlane.f32.xlu0 %v423
      %v533 = vpop.xlane.xlu0 %532
      %534 = vadd.xlane.f32.xlu0 %v424
      %v535 = vpop.xlane.xlu0 %534
      %536 = vadd.xlane.f32.xlu0 %v425
      %v537 = vpop.xlane.xlu0 %536
      %538 = vadd.xlane.f32.xlu0 %v426
      %v539 = vpop.xlane.xlu0 %538
      %540 = vadd.xlane.f32.xlu0 %v427
      %v541 = vpop.xlane.xlu0 %540
      %542 = vadd.xlane.f32.xlu0 %v428
      %v543 = vpop.xlane.xlu0 %542
      %544 = vadd.xlane.f32.xlu0 %v429
      %v545 = vpop.xlane.xlu0 %544
      %546 = vadd.xlane.f32.xlu0 %v430
      %v547 = vpop.xlane.xlu0 %546
      %548 = vadd.xlane.f32.xlu0 %v431
      %v549 = vpop.xlane.xlu0 %548
      %550 = vadd.xlane.f32.xlu0 %v432
      %v551 = vpop.xlane.xlu0 %550
      %552 = vadd.xlane.f32.xlu0 %v433
      %v553 = vpop.xlane.xlu0 %552
      %554 = vadd.xlane.f32.xlu0 %v434
      %v555 = vpop.xlane.xlu0 %554
      %556 = vadd.xlane.f32.xlu0 %v435
      %v557 = vpop.xlane.xlu0 %556
      %558 = vadd.xlane.f32.xlu0 %v436
      %v559 = vpop.xlane.xlu0 %558
      %560 = vadd.xlane.f32.xlu0 %v437
      %v561 = vpop.xlane.xlu0 %560
      %562 = vadd.xlane.f32.xlu0 %v438
      %v563 = vpop.xlane.xlu0 %562
      %564 = vadd.xlane.f32.xlu0 %v439
      %v565 = vpop.xlane.xlu0 %564
      %566 = vadd.xlane.f32.xlu0 %v440
      %v567 = vpop.xlane.xlu0 %566
      %568 = vadd.xlane.f32.xlu0 %v441
      %v569 = vpop.xlane.xlu0 %568
      %v570 = vmul.f32 %v443, %v249
      %v571 = vmul.f32 %v445, %v249
      %v572 = vmul.f32 %v447, %v249
      %v573 = vmul.f32 %v449, %v249
      %v574 = vmul.f32 %v451, %v249
      %v575 = vmul.f32 %v453, %v249
      %v576 = vmul.f32 %v455, %v249
      %v577 = vmul.f32 %v457, %v249
      %v578 = vmul.f32 %v459, %v249
      %v579 = vmul.f32 %v461, %v249
      %v580 = vmul.f32 %v463, %v249
      %v581 = vmul.f32 %v465, %v249
      %v582 = vmul.f32 %v467, %v249
      %v583 = vmul.f32 %v469, %v249
      %v584 = vmul.f32 %v471, %v249
      %v585 = vmul.f32 %v473, %v249
      %v586 = vmul.f32 %v475, %v249
      %v587 = vmul.f32 %v477, %v249
      %v588 = vmul.f32 %v479, %v249
      %v589 = vmul.f32 %v481, %v249
      %v590 = vmul.f32 %v483, %v249
      %v591 = vmul.f32 %v485, %v249
      %v592 = vmul.f32 %v487, %v249
      %v593 = vmul.f32 %v489, %v249
      %v594 = vmul.f32 %v491, %v249
      %v595 = vmul.f32 %v493, %v249
      %v596 = vmul.f32 %v495, %v249
      %v597 = vmul.f32 %v497, %v249
      %v598 = vmul.f32 %v499, %v249
      %v599 = vmul.f32 %v501, %v249
      %v600 = vmul.f32 %v503, %v249
      %v601 = vmul.f32 %v505, %v249
      %v602 = vmul.f32 %v507, %v249
      %v603 = vmul.f32 %v509, %v249
      %v604 = vmul.f32 %v511, %v249
      %v605 = vmul.f32 %v513, %v249
      %v606 = vmul.f32 %v515, %v249
      %v607 = vmul.f32 %v517, %v249
      %v608 = vmul.f32 %v519, %v249
      %v609 = vmul.f32 %v521, %v249
      %v610 = vmul.f32 %v523, %v249
      %v611 = vmul.f32 %v525, %v249
      %v612 = vmul.f32 %v527, %v249
      %v613 = vmul.f32 %v529, %v249
      %v614 = vmul.f32 %v531, %v249
      %v615 = vmul.f32 %v533, %v249
      %v616 = vmul.f32 %v535, %v249
      %v617 = vmul.f32 %v537, %v249
      %v618 = vmul.f32 %v539, %v249
      %v619 = vmul.f32 %v541, %v249
      %v620 = vmul.f32 %v543, %v249
      %v621 = vmul.f32 %v545, %v249
      %v622 = vmul.f32 %v547, %v249
      %v623 = vmul.f32 %v549, %v249
      %v624 = vmul.f32 %v551, %v249
      %v625 = vmul.f32 %v553, %v249
      %v626 = vmul.f32 %v555, %v249
      %v627 = vmul.f32 %v557, %v249
      %v628 = vmul.f32 %v559, %v249
      %v629 = vmul.f32 %v561, %v249
      %v630 = vmul.f32 %v563, %v249
      %v631 = vmul.f32 %v565, %v249
      %v632 = vmul.f32 %v567, %v249
      %v633 = vmul.f32 %v569, %v249
      %v634 = vadd.f32 %v570, 1e-05
      %v635 = vadd.f32 %v571, 1e-05
      %v636 = vadd.f32 %v572, 1e-05
      %v637 = vadd.f32 %v573, 1e-05
      %v638 = vadd.f32 %v574, 1e-05
      %v639 = vadd.f32 %v575, 1e-05
      %v640 = vadd.f32 %v576, 1e-05
      %v641 = vadd.f32 %v577, 1e-05
      %v642 = vadd.f32 %v578, 1e-05
      %v643 = vadd.f32 %v579, 1e-05
      %v644 = vadd.f32 %v580, 1e-05
      %v645 = vadd.f32 %v581, 1e-05
      %v646 = vadd.f32 %v582, 1e-05
      %v647 = vadd.f32 %v583, 1e-05
      %v648 = vadd.f32 %v584, 1e-05
      %v649 = vadd.f32 %v585, 1e-05
      %v650 = vadd.f32 %v586, 1e-05
      %v651 = vadd.f32 %v587, 1e-05
      %v652 = vadd.f32 %v588, 1e-05
      %v653 = vadd.f32 %v589, 1e-05
      %v654 = vadd.f32 %v590, 1e-05
      %v655 = vadd.f32 %v591, 1e-05
      %v656 = vadd.f32 %v592, 1e-05
      %v657 = vadd.f32 %v593, 1e-05
      %v658 = vadd.f32 %v594, 1e-05
      %v659 = vadd.f32 %v595, 1e-05
      %v660 = vadd.f32 %v596, 1e-05
      %v661 = vadd.f32 %v597, 1e-05
      %v662 = vadd.f32 %v598, 1e-05
      %v663 = vadd.f32 %v599, 1e-05
      %v664 = vadd.f32 %v600, 1e-05
      %v665 = vadd.f32 %v601, 1e-05
      %v666 = vadd.f32 %v602, 1e-05
      %v667 = vadd.f32 %v603, 1e-05
      %v668 = vadd.f32 %v604, 1e-05
      %v669 = vadd.f32 %v605, 1e-05
      %v670 = vadd.f32 %v606, 1e-05
      %v671 = vadd.f32 %v607, 1e-05
      %v672 = vadd.f32 %v608, 1e-05
      %v673 = vadd.f32 %v609, 1e-05
      %v674 = vadd.f32 %v610, 1e-05
      %v675 = vadd.f32 %v611, 1e-05
      %v676 = vadd.f32 %v612, 1e-05
      %v677 = vadd.f32 %v613, 1e-05
      %v678 = vadd.f32 %v614, 1e-05
      %v679 = vadd.f32 %v615, 1e-05
      %v680 = vadd.f32 %v616, 1e-05
      %v681 = vadd.f32 %v617, 1e-05
      %v682 = vadd.f32 %v618, 1e-05
      %v683 = vadd.f32 %v619, 1e-05
      %v684 = vadd.f32 %v620, 1e-05
      %v685 = vadd.f32 %v621, 1e-05
      %v686 = vadd.f32 %v622, 1e-05
      %v687 = vadd.f32 %v623, 1e-05
      %v688 = vadd.f32 %v624, 1e-05
      %v689 = vadd.f32 %v625, 1e-05
      %v690 = vadd.f32 %v626, 1e-05
      %v691 = vadd.f32 %v627, 1e-05
      %v692 = vadd.f32 %v628, 1e-05
      %v693 = vadd.f32 %v629, 1e-05
      %v694 = vadd.f32 %v630, 1e-05
      %v695 = vadd.f32 %v631, 1e-05
      %v696 = vadd.f32 %v632, 1e-05
      %v697 = vadd.f32 %v633, 1e-05
      %v698 = vrsqrt.pop %v634
      %v699 = vmul.f32 %v698, %v634
      %v700 = vmul.f32 %v699, %v698
      %v701 = vmul.f32 0.5, %v700
      %v702 = vsub.f32 1.5, %v701
      %v703 = vmul.f32 %v698, %v702
      %vm704 = vweird.f32 %v634
      %vm705 = vweird.f32 %v698
      %vm706 = vmor %vm704, %vm705
      %v707 = vsel %vm706, %v698, %v703
      %v708 = vrsqrt.pop %v635
      %v709 = vmul.f32 %v708, %v635
      %v710 = vmul.f32 %v709, %v708
      %v711 = vmul.f32 0.5, %v710
      %v712 = vsub.f32 1.5, %v711
      %v713 = vmul.f32 %v708, %v712
      %vm714 = vweird.f32 %v635
      %vm715 = vweird.f32 %v708
      %vm716 = vmor %vm714, %vm715
      %v717 = vsel %vm716, %v708, %v713
      %v718 = vrsqrt.pop %v636
      %v719 = vmul.f32 %v718, %v636
      %v720 = vmul.f32 %v719, %v718
      %v721 = vmul.f32 0.5, %v720
      %v722 = vsub.f32 1.5, %v721
      %v723 = vmul.f32 %v718, %v722
      %vm724 = vweird.f32 %v636
      %vm725 = vweird.f32 %v718
      %vm726 = vmor %vm724, %vm725
      %v727 = vsel %vm726, %v718, %v723
      %v728 = vrsqrt.pop %v637
      %v729 = vmul.f32 %v728, %v637
      %v730 = vmul.f32 %v729, %v728
      %v731 = vmul.f32 0.5, %v730
      %v732 = vsub.f32 1.5, %v731
      %v733 = vmul.f32 %v728, %v732
      %vm734 = vweird.f32 %v637
      %vm735 = vweird.f32 %v728
      %vm736 = vmor %vm734, %vm735
      %v737 = vsel %vm736, %v728, %v733
      %v738 = vrsqrt.pop %v638
      %v739 = vmul.f32 %v738, %v638
      %v740 = vmul.f32 %v739, %v738
      %v741 = vmul.f32 0.5, %v740
      %v742 = vsub.f32 1.5, %v741
      %v743 = vmul.f32 %v738, %v742
      %vm744 = vweird.f32 %v638
      %vm745 = vweird.f32 %v738
      %vm746 = vmor %vm744, %vm745
      %v747 = vsel %vm746, %v738, %v743
      %v748 = vrsqrt.pop %v639
      %v749 = vmul.f32 %v748, %v639
      %v750 = vmul.f32 %v749, %v748
      %v751 = vmul.f32 0.5, %v750
      %v752 = vsub.f32 1.5, %v751
      %v753 = vmul.f32 %v748, %v752
      %vm754 = vweird.f32 %v639
      %vm755 = vweird.f32 %v748
      %vm756 = vmor %vm754, %vm755
      %v757 = vsel %vm756, %v748, %v753
      %v758 = vrsqrt.pop %v640
      %v759 = vmul.f32 %v758, %v640
      %v760 = vmul.f32 %v759, %v758
      %v761 = vmul.f32 0.5, %v760
      %v762 = vsub.f32 1.5, %v761
      %v763 = vmul.f32 %v758, %v762
      %vm764 = vweird.f32 %v640
      %vm765 = vweird.f32 %v758
      %vm766 = vmor %vm764, %vm765
      %v767 = vsel %vm766, %v758, %v763
      %v768 = vrsqrt.pop %v641
      %v769 = vmul.f32 %v768, %v641
      %v770 = vmul.f32 %v769, %v768
      %v771 = vmul.f32 0.5, %v770
      %v772 = vsub.f32 1.5, %v771
      %v773 = vmul.f32 %v768, %v772
      %vm774 = vweird.f32 %v641
      %vm775 = vweird.f32 %v768
      %vm776 = vmor %vm774, %vm775
      %v777 = vsel %vm776, %v768, %v773
      %v778 = vrsqrt.pop %v642
      %v779 = vmul.f32 %v778, %v642
      %v780 = vmul.f32 %v779, %v778
      %v781 = vmul.f32 0.5, %v780
      %v782 = vsub.f32 1.5, %v781
      %v783 = vmul.f32 %v778, %v782
      %vm784 = vweird.f32 %v642
      %vm785 = vweird.f32 %v778
      %vm786 = vmor %vm784, %vm785
      %v787 = vsel %vm786, %v778, %v783
      %v788 = vrsqrt.pop %v643
      %v789 = vmul.f32 %v788, %v643
      %v790 = vmul.f32 %v789, %v788
      %v791 = vmul.f32 0.5, %v790
      %v792 = vsub.f32 1.5, %v791
      %v793 = vmul.f32 %v788, %v792
      %vm794 = vweird.f32 %v643
      %vm795 = vweird.f32 %v788
      %vm796 = vmor %vm794, %vm795
      %v797 = vsel %vm796, %v788, %v793
      %v798 = vrsqrt.pop %v644
      %v799 = vmul.f32 %v798, %v644
      %v800 = vmul.f32 %v799, %v798
      %v801 = vmul.f32 0.5, %v800
      %v802 = vsub.f32 1.5, %v801
      %v803 = vmul.f32 %v798, %v802
      %vm804 = vweird.f32 %v644
      %vm805 = vweird.f32 %v798
      %vm806 = vmor %vm804, %vm805
      %v807 = vsel %vm806, %v798, %v803
      %v808 = vrsqrt.pop %v645
      %v809 = vmul.f32 %v808, %v645
      %v810 = vmul.f32 %v809, %v808
      %v811 = vmul.f32 0.5, %v810
      %v812 = vsub.f32 1.5, %v811
      %v813 = vmul.f32 %v808, %v812
      %vm814 = vweird.f32 %v645
      %vm815 = vweird.f32 %v808
      %vm816 = vmor %vm814, %vm815
      %v817 = vsel %vm816, %v808, %v813
      %v818 = vrsqrt.pop %v646
      %v819 = vmul.f32 %v818, %v646
      %v820 = vmul.f32 %v819, %v818
      %v821 = vmul.f32 0.5, %v820
      %v822 = vsub.f32 1.5, %v821
      %v823 = vmul.f32 %v818, %v822
      %vm824 = vweird.f32 %v646
      %vm825 = vweird.f32 %v818
      %vm826 = vmor %vm824, %vm825
      %v827 = vsel %vm826, %v818, %v823
      %v828 = vrsqrt.pop %v647
      %v829 = vmul.f32 %v828, %v647
      %v830 = vmul.f32 %v829, %v828
      %v831 = vmul.f32 0.5, %v830
      %v832 = vsub.f32 1.5, %v831
      %v833 = vmul.f32 %v828, %v832
      %vm834 = vweird.f32 %v647
      %vm835 = vweird.f32 %v828
      %vm836 = vmor %vm834, %vm835
      %v837 = vsel %vm836, %v828, %v833
      %v838 = vrsqrt.pop %v648
      %v839 = vmul.f32 %v838, %v648
      %v840 = vmul.f32 %v839, %v838
      %v841 = vmul.f32 0.5, %v840
      %v842 = vsub.f32 1.5, %v841
      %v843 = vmul.f32 %v838, %v842
      %vm844 = vweird.f32 %v648
      %vm845 = vweird.f32 %v838
      %vm846 = vmor %vm844, %vm845
      %v847 = vsel %vm846, %v838, %v843
      %v848 = vrsqrt.pop %v649
      %v849 = vmul.f32 %v848, %v649
      %v850 = vmul.f32 %v849, %v848
      %v851 = vmul.f32 0.5, %v850
      %v852 = vsub.f32 1.5, %v851
      %v853 = vmul.f32 %v848, %v852
      %vm854 = vweird.f32 %v649
      %vm855 = vweird.f32 %v848
      %vm856 = vmor %vm854, %vm855
      %v857 = vsel %vm856, %v848, %v853
      %v858 = vrsqrt.pop %v650
      %v859 = vmul.f32 %v858, %v650
      %v860 = vmul.f32 %v859, %v858
      %v861 = vmul.f32 0.5, %v860
      %v862 = vsub.f32 1.5, %v861
      %v863 = vmul.f32 %v858, %v862
      %vm864 = vweird.f32 %v650
      %vm865 = vweird.f32 %v858
      %vm866 = vmor %vm864, %vm865
      %v867 = vsel %vm866, %v858, %v863
      %v868 = vrsqrt.pop %v651
      %v869 = vmul.f32 %v868, %v651
      %v870 = vmul.f32 %v869, %v868
      %v871 = vmul.f32 0.5, %v870
      %v872 = vsub.f32 1.5, %v871
      %v873 = vmul.f32 %v868, %v872
      %vm874 = vweird.f32 %v651
      %vm875 = vweird.f32 %v868
      %vm876 = vmor %vm874, %vm875
      %v877 = vsel %vm876, %v868, %v873
      %v878 = vrsqrt.pop %v652
      %v879 = vmul.f32 %v878, %v652
      %v880 = vmul.f32 %v879, %v878
      %v881 = vmul.f32 0.5, %v880
      %v882 = vsub.f32 1.5, %v881
      %v883 = vmul.f32 %v878, %v882
      %vm884 = vweird.f32 %v652
      %vm885 = vweird.f32 %v878
      %vm886 = vmor %vm884, %vm885
      %v887 = vsel %vm886, %v878, %v883
      %v888 = vrsqrt.pop %v653
      %v889 = vmul.f32 %v888, %v653
      %v890 = vmul.f32 %v889, %v888
      %v891 = vmul.f32 0.5, %v890
      %v892 = vsub.f32 1.5, %v891
      %v893 = vmul.f32 %v888, %v892
      %vm894 = vweird.f32 %v653
      %vm895 = vweird.f32 %v888
      %vm896 = vmor %vm894, %vm895
      %v897 = vsel %vm896, %v888, %v893
      %v898 = vrsqrt.pop %v654
      %v899 = vmul.f32 %v898, %v654
      %v900 = vmul.f32 %v899, %v898
      %v901 = vmul.f32 0.5, %v900
      %v902 = vsub.f32 1.5, %v901
      %v903 = vmul.f32 %v898, %v902
      %vm904 = vweird.f32 %v654
      %vm905 = vweird.f32 %v898
      %vm906 = vmor %vm904, %vm905
      %v907 = vsel %vm906, %v898, %v903
      %v908 = vrsqrt.pop %v655
      %v909 = vmul.f32 %v908, %v655
      %v910 = vmul.f32 %v909, %v908
      %v911 = vmul.f32 0.5, %v910
      %v912 = vsub.f32 1.5, %v911
      %v913 = vmul.f32 %v908, %v912
      %vm914 = vweird.f32 %v655
      %vm915 = vweird.f32 %v908
      %vm916 = vmor %vm914, %vm915
      %v917 = vsel %vm916, %v908, %v913
      %v918 = vrsqrt.pop %v656
      %v919 = vmul.f32 %v918, %v656
      %v920 = vmul.f32 %v919, %v918
      %v921 = vmul.f32 0.5, %v920
      %v922 = vsub.f32 1.5, %v921
      %v923 = vmul.f32 %v918, %v922
      %vm924 = vweird.f32 %v656
      %vm925 = vweird.f32 %v918
      %vm926 = vmor %vm924, %vm925
      %v927 = vsel %vm926, %v918, %v923
      %v928 = vrsqrt.pop %v657
      %v929 = vmul.f32 %v928, %v657
      %v930 = vmul.f32 %v929, %v928
      %v931 = vmul.f32 0.5, %v930
      %v932 = vsub.f32 1.5, %v931
      %v933 = vmul.f32 %v928, %v932
      %vm934 = vweird.f32 %v657
      %vm935 = vweird.f32 %v928
      %vm936 = vmor %vm934, %vm935
      %v937 = vsel %vm936, %v928, %v933
      %v938 = vrsqrt.pop %v658
      %v939 = vmul.f32 %v938, %v658
      %v940 = vmul.f32 %v939, %v938
      %v941 = vmul.f32 0.5, %v940
      %v942 = vsub.f32 1.5, %v941
      %v943 = vmul.f32 %v938, %v942
      %vm944 = vweird.f32 %v658
      %vm945 = vweird.f32 %v938
      %vm946 = vmor %vm944, %vm945
      %v947 = vsel %vm946, %v938, %v943
      %v948 = vrsqrt.pop %v659
      %v949 = vmul.f32 %v948, %v659
      %v950 = vmul.f32 %v949, %v948
      %v951 = vmul.f32 0.5, %v950
      %v952 = vsub.f32 1.5, %v951
      %v953 = vmul.f32 %v948, %v952
      %vm954 = vweird.f32 %v659
      %vm955 = vweird.f32 %v948
      %vm956 = vmor %vm954, %vm955
      %v957 = vsel %vm956, %v948, %v953
      %v958 = vrsqrt.pop %v660
      %v959 = vmul.f32 %v958, %v660
      %v960 = vmul.f32 %v959, %v958
      %v961 = vmul.f32 0.5, %v960
      %v962 = vsub.f32 1.5, %v961
      %v963 = vmul.f32 %v958, %v962
      %vm964 = vweird.f32 %v660
      %vm965 = vweird.f32 %v958
      %vm966 = vmor %vm964, %vm965
      %v967 = vsel %vm966, %v958, %v963
      %v968 = vrsqrt.pop %v661
      %v969 = vmul.f32 %v968, %v661
      %v970 = vmul.f32 %v969, %v968
      %v971 = vmul.f32 0.5, %v970
      %v972 = vsub.f32 1.5, %v971
      %v973 = vmul.f32 %v968, %v972
      %vm974 = vweird.f32 %v661
      %vm975 = vweird.f32 %v968
      %vm976 = vmor %vm974, %vm975
      %v977 = vsel %vm976, %v968, %v973
      %v978 = vrsqrt.pop %v662
      %v979 = vmul.f32 %v978, %v662
      %v980 = vmul.f32 %v979, %v978
      %v981 = vmul.f32 0.5, %v980
      %v982 = vsub.f32 1.5, %v981
      %v983 = vmul.f32 %v978, %v982
      %vm984 = vweird.f32 %v662
      %vm985 = vweird.f32 %v978
      %vm986 = vmor %vm984, %vm985
      %v987 = vsel %vm986, %v978, %v983
      %v988 = vrsqrt.pop %v663
      %v989 = vmul.f32 %v988, %v663
      %v990 = vmul.f32 %v989, %v988
      %v991 = vmul.f32 0.5, %v990
      %v992 = vsub.f32 1.5, %v991
      %v993 = vmul.f32 %v988, %v992
      %vm994 = vweird.f32 %v663
      %vm995 = vweird.f32 %v988
      %vm996 = vmor %vm994, %vm995
      %v997 = vsel %vm996, %v988, %v993
      %v998 = vrsqrt.pop %v664
      %v999 = vmul.f32 %v998, %v664
      %v1000 = vmul.f32 %v999, %v998
      %v1001 = vmul.f32 0.5, %v1000
      %v1002 = vsub.f32 1.5, %v1001
      %v1003 = vmul.f32 %v998, %v1002
      %vm1004 = vweird.f32 %v664
      %vm1005 = vweird.f32 %v998
      %vm1006 = vmor %vm1004, %vm1005
      %v1007 = vsel %vm1006, %v998, %v1003
      %v1008 = vrsqrt.pop %v665
      %v1009 = vmul.f32 %v1008, %v665
      %v1010 = vmul.f32 %v1009, %v1008
      %v1011 = vmul.f32 0.5, %v1010
      %v1012 = vsub.f32 1.5, %v1011
      %v1013 = vmul.f32 %v1008, %v1012
      %vm1014 = vweird.f32 %v665
      %vm1015 = vweird.f32 %v1008
      %vm1016 = vmor %vm1014, %vm1015
      %v1017 = vsel %vm1016, %v1008, %v1013
      %v1018 = vrsqrt.pop %v666
      %v1019 = vmul.f32 %v1018, %v666
      %v1020 = vmul.f32 %v1019, %v1018
      %v1021 = vmul.f32 0.5, %v1020
      %v1022 = vsub.f32 1.5, %v1021
      %v1023 = vmul.f32 %v1018, %v1022
      %vm1024 = vweird.f32 %v666
      %vm1025 = vweird.f32 %v1018
      %vm1026 = vmor %vm1024, %vm1025
      %v1027 = vsel %vm1026, %v1018, %v1023
      %v1028 = vrsqrt.pop %v667
      %v1029 = vmul.f32 %v1028, %v667
      %v1030 = vmul.f32 %v1029, %v1028
      %v1031 = vmul.f32 0.5, %v1030
      %v1032 = vsub.f32 1.5, %v1031
      %v1033 = vmul.f32 %v1028, %v1032
      %vm1034 = vweird.f32 %v667
      %vm1035 = vweird.f32 %v1028
      %vm1036 = vmor %vm1034, %vm1035
      %v1037 = vsel %vm1036, %v1028, %v1033
      %v1038 = vrsqrt.pop %v668
      %v1039 = vmul.f32 %v1038, %v668
      %v1040 = vmul.f32 %v1039, %v1038
      %v1041 = vmul.f32 0.5, %v1040
      %v1042 = vsub.f32 1.5, %v1041
      %v1043 = vmul.f32 %v1038, %v1042
      %vm1044 = vweird.f32 %v668
      %vm1045 = vweird.f32 %v1038
      %vm1046 = vmor %vm1044, %vm1045
      %v1047 = vsel %vm1046, %v1038, %v1043
      %v1048 = vrsqrt.pop %v669
      %v1049 = vmul.f32 %v1048, %v669
      %v1050 = vmul.f32 %v1049, %v1048
      %v1051 = vmul.f32 0.5, %v1050
      %v1052 = vsub.f32 1.5, %v1051
      %v1053 = vmul.f32 %v1048, %v1052
      %vm1054 = vweird.f32 %v669
      %vm1055 = vweird.f32 %v1048
      %vm1056 = vmor %vm1054, %vm1055
      %v1057 = vsel %vm1056, %v1048, %v1053
      %v1058 = vrsqrt.pop %v670
      %v1059 = vmul.f32 %v1058, %v670
      %v1060 = vmul.f32 %v1059, %v1058
      %v1061 = vmul.f32 0.5, %v1060
      %v1062 = vsub.f32 1.5, %v1061
      %v1063 = vmul.f32 %v1058, %v1062
      %vm1064 = vweird.f32 %v670
      %vm1065 = vweird.f32 %v1058
      %vm1066 = vmor %vm1064, %vm1065
      %v1067 = vsel %vm1066, %v1058, %v1063
      %v1068 = vrsqrt.pop %v671
      %v1069 = vmul.f32 %v1068, %v671
      %v1070 = vmul.f32 %v1069, %v1068
      %v1071 = vmul.f32 0.5, %v1070
      %v1072 = vsub.f32 1.5, %v1071
      %v1073 = vmul.f32 %v1068, %v1072
      %vm1074 = vweird.f32 %v671
      %vm1075 = vweird.f32 %v1068
      %vm1076 = vmor %vm1074, %vm1075
      %v1077 = vsel %vm1076, %v1068, %v1073
      %v1078 = vrsqrt.pop %v672
      %v1079 = vmul.f32 %v1078, %v672
      %v1080 = vmul.f32 %v1079, %v1078
      %v1081 = vmul.f32 0.5, %v1080
      %v1082 = vsub.f32 1.5, %v1081
      %v1083 = vmul.f32 %v1078, %v1082
      %vm1084 = vweird.f32 %v672
      %vm1085 = vweird.f32 %v1078
      %vm1086 = vmor %vm1084, %vm1085
      %v1087 = vsel %vm1086, %v1078, %v1083
      %v1088 = vrsqrt.pop %v673
      %v1089 = vmul.f32 %v1088, %v673
      %v1090 = vmul.f32 %v1089, %v1088
      %v1091 = vmul.f32 0.5, %v1090
      %v1092 = vsub.f32 1.5, %v1091
      %v1093 = vmul.f32 %v1088, %v1092
      %vm1094 = vweird.f32 %v673
      %vm1095 = vweird.f32 %v1088
      %vm1096 = vmor %vm1094, %vm1095
      %v1097 = vsel %vm1096, %v1088, %v1093
      %v1098 = vrsqrt.pop %v674
      %v1099 = vmul.f32 %v1098, %v674
      %v1100 = vmul.f32 %v1099, %v1098
      %v1101 = vmul.f32 0.5, %v1100
      %v1102 = vsub.f32 1.5, %v1101
      %v1103 = vmul.f32 %v1098, %v1102
      %vm1104 = vweird.f32 %v674
      %vm1105 = vweird.f32 %v1098
      %vm1106 = vmor %vm1104, %vm1105
      %v1107 = vsel %vm1106, %v1098, %v1103
      %v1108 = vrsqrt.pop %v675
      %v1109 = vmul.f32 %v1108, %v675
      %v1110 = vmul.f32 %v1109, %v1108
      %v1111 = vmul.f32 0.5, %v1110
      %v1112 = vsub.f32 1.5, %v1111
      %v1113 = vmul.f32 %v1108, %v1112
      %vm1114 = vweird.f32 %v675
      %vm1115 = vweird.f32 %v1108
      %vm1116 = vmor %vm1114, %vm1115
      %v1117 = vsel %vm1116, %v1108, %v1113
      %v1118 = vrsqrt.pop %v676
      %v1119 = vmul.f32 %v1118, %v676
      %v1120 = vmul.f32 %v1119, %v1118
      %v1121 = vmul.f32 0.5, %v1120
      %v1122 = vsub.f32 1.5, %v1121
      %v1123 = vmul.f32 %v1118, %v1122
      %vm1124 = vweird.f32 %v676
      %vm1125 = vweird.f32 %v1118
      %vm1126 = vmor %vm1124, %vm1125
      %v1127 = vsel %vm1126, %v1118, %v1123
      %v1128 = vrsqrt.pop %v677
      %v1129 = vmul.f32 %v1128, %v677
      %v1130 = vmul.f32 %v1129, %v1128
      %v1131 = vmul.f32 0.5, %v1130
      %v1132 = vsub.f32 1.5, %v1131
      %v1133 = vmul.f32 %v1128, %v1132
      %vm1134 = vweird.f32 %v677
      %vm1135 = vweird.f32 %v1128
      %vm1136 = vmor %vm1134, %vm1135
      %v1137 = vsel %vm1136, %v1128, %v1133
      %v1138 = vrsqrt.pop %v678
      %v1139 = vmul.f32 %v1138, %v678
      %v1140 = vmul.f32 %v1139, %v1138
      %v1141 = vmul.f32 0.5, %v1140
      %v1142 = vsub.f32 1.5, %v1141
      %v1143 = vmul.f32 %v1138, %v1142
      %vm1144 = vweird.f32 %v678
      %vm1145 = vweird.f32 %v1138
      %vm1146 = vmor %vm1144, %vm1145
      %v1147 = vsel %vm1146, %v1138, %v1143
      %v1148 = vrsqrt.pop %v679
      %v1149 = vmul.f32 %v1148, %v679
      %v1150 = vmul.f32 %v1149, %v1148
      %v1151 = vmul.f32 0.5, %v1150
      %v1152 = vsub.f32 1.5, %v1151
      %v1153 = vmul.f32 %v1148, %v1152
      %vm1154 = vweird.f32 %v679
      %vm1155 = vweird.f32 %v1148
      %vm1156 = vmor %vm1154, %vm1155
      %v1157 = vsel %vm1156, %v1148, %v1153
      %v1158 = vrsqrt.pop %v680
      %v1159 = vmul.f32 %v1158, %v680
      %v1160 = vmul.f32 %v1159, %v1158
      %v1161 = vmul.f32 0.5, %v1160
      %v1162 = vsub.f32 1.5, %v1161
      %v1163 = vmul.f32 %v1158, %v1162
      %vm1164 = vweird.f32 %v680
      %vm1165 = vweird.f32 %v1158
      %vm1166 = vmor %vm1164, %vm1165
      %v1167 = vsel %vm1166, %v1158, %v1163
      %v1168 = vrsqrt.pop %v681
      %v1169 = vmul.f32 %v1168, %v681
      %v1170 = vmul.f32 %v1169, %v1168
      %v1171 = vmul.f32 0.5, %v1170
      %v1172 = vsub.f32 1.5, %v1171
      %v1173 = vmul.f32 %v1168, %v1172
      %vm1174 = vweird.f32 %v681
      %vm1175 = vweird.f32 %v1168
      %vm1176 = vmor %vm1174, %vm1175
      %v1177 = vsel %vm1176, %v1168, %v1173
      %v1178 = vrsqrt.pop %v682
      %v1179 = vmul.f32 %v1178, %v682
      %v1180 = vmul.f32 %v1179, %v1178
      %v1181 = vmul.f32 0.5, %v1180
      %v1182 = vsub.f32 1.5, %v1181
      %v1183 = vmul.f32 %v1178, %v1182
      %vm1184 = vweird.f32 %v682
      %vm1185 = vweird.f32 %v1178
      %vm1186 = vmor %vm1184, %vm1185
      %v1187 = vsel %vm1186, %v1178, %v1183
      %v1188 = vrsqrt.pop %v683
      %v1189 = vmul.f32 %v1188, %v683
      %v1190 = vmul.f32 %v1189, %v1188
      %v1191 = vmul.f32 0.5, %v1190
      %v1192 = vsub.f32 1.5, %v1191
      %v1193 = vmul.f32 %v1188, %v1192
      %vm1194 = vweird.f32 %v683
      %vm1195 = vweird.f32 %v1188
      %vm1196 = vmor %vm1194, %vm1195
      %v1197 = vsel %vm1196, %v1188, %v1193
      %v1198 = vrsqrt.pop %v684
      %v1199 = vmul.f32 %v1198, %v684
      %v1200 = vmul.f32 %v1199, %v1198
      %v1201 = vmul.f32 0.5, %v1200
      %v1202 = vsub.f32 1.5, %v1201
      %v1203 = vmul.f32 %v1198, %v1202
      %vm1204 = vweird.f32 %v684
      %vm1205 = vweird.f32 %v1198
      %vm1206 = vmor %vm1204, %vm1205
      %v1207 = vsel %vm1206, %v1198, %v1203
      %v1208 = vrsqrt.pop %v685
      %v1209 = vmul.f32 %v1208, %v685
      %v1210 = vmul.f32 %v1209, %v1208
      %v1211 = vmul.f32 0.5, %v1210
      %v1212 = vsub.f32 1.5, %v1211
      %v1213 = vmul.f32 %v1208, %v1212
      %vm1214 = vweird.f32 %v685
      %vm1215 = vweird.f32 %v1208
      %vm1216 = vmor %vm1214, %vm1215
      %v1217 = vsel %vm1216, %v1208, %v1213
      %v1218 = vrsqrt.pop %v686
      %v1219 = vmul.f32 %v1218, %v686
      %v1220 = vmul.f32 %v1219, %v1218
      %v1221 = vmul.f32 0.5, %v1220
      %v1222 = vsub.f32 1.5, %v1221
      %v1223 = vmul.f32 %v1218, %v1222
      %vm1224 = vweird.f32 %v686
      %vm1225 = vweird.f32 %v1218
      %vm1226 = vmor %vm1224, %vm1225
      %v1227 = vsel %vm1226, %v1218, %v1223
      %v1228 = vrsqrt.pop %v687
      %v1229 = vmul.f32 %v1228, %v687
      %v1230 = vmul.f32 %v1229, %v1228
      %v1231 = vmul.f32 0.5, %v1230
      %v1232 = vsub.f32 1.5, %v1231
      %v1233 = vmul.f32 %v1228, %v1232
      %vm1234 = vweird.f32 %v687
      %vm1235 = vweird.f32 %v1228
      %vm1236 = vmor %vm1234, %vm1235
      %v1237 = vsel %vm1236, %v1228, %v1233
      %v1238 = vrsqrt.pop %v688
      %v1239 = vmul.f32 %v1238, %v688
      %v1240 = vmul.f32 %v1239, %v1238
      %v1241 = vmul.f32 0.5, %v1240
      %v1242 = vsub.f32 1.5, %v1241
      %v1243 = vmul.f32 %v1238, %v1242
      %vm1244 = vweird.f32 %v688
      %vm1245 = vweird.f32 %v1238
      %vm1246 = vmor %vm1244, %vm1245
      %v1247 = vsel %vm1246, %v1238, %v1243
      %v1248 = vrsqrt.pop %v689
      %v1249 = vmul.f32 %v1248, %v689
      %v1250 = vmul.f32 %v1249, %v1248
      %v1251 = vmul.f32 0.5, %v1250
      %v1252 = vsub.f32 1.5, %v1251
      %v1253 = vmul.f32 %v1248, %v1252
      %vm1254 = vweird.f32 %v689
      %vm1255 = vweird.f32 %v1248
      %vm1256 = vmor %vm1254, %vm1255
      %v1257 = vsel %vm1256, %v1248, %v1253
      %v1258 = vrsqrt.pop %v690
      %v1259 = vmul.f32 %v1258, %v690
      %v1260 = vmul.f32 %v1259, %v1258
      %v1261 = vmul.f32 0.5, %v1260
      %v1262 = vsub.f32 1.5, %v1261
      %v1263 = vmul.f32 %v1258, %v1262
      %vm1264 = vweird.f32 %v690
      %vm1265 = vweird.f32 %v1258
      %vm1266 = vmor %vm1264, %vm1265
      %v1267 = vsel %vm1266, %v1258, %v1263
      %v1268 = vrsqrt.pop %v691
      %v1269 = vmul.f32 %v1268, %v691
      %v1270 = vmul.f32 %v1269, %v1268
      %v1271 = vmul.f32 0.5, %v1270
      %v1272 = vsub.f32 1.5, %v1271
      %v1273 = vmul.f32 %v1268, %v1272
      %vm1274 = vweird.f32 %v691
      %vm1275 = vweird.f32 %v1268
      %vm1276 = vmor %vm1274, %vm1275
      %v1277 = vsel %vm1276, %v1268, %v1273
      %v1278 = vrsqrt.pop %v692
      %v1279 = vmul.f32 %v1278, %v692
      %v1280 = vmul.f32 %v1279, %v1278
      %v1281 = vmul.f32 0.5, %v1280
      %v1282 = vsub.f32 1.5, %v1281
      %v1283 = vmul.f32 %v1278, %v1282
      %vm1284 = vweird.f32 %v692
      %vm1285 = vweird.f32 %v1278
      %vm1286 = vmor %vm1284, %vm1285
      %v1287 = vsel %vm1286, %v1278, %v1283
      %v1288 = vrsqrt.pop %v693
      %v1289 = vmul.f32 %v1288, %v693
      %v1290 = vmul.f32 %v1289, %v1288
      %v1291 = vmul.f32 0.5, %v1290
      %v1292 = vsub.f32 1.5, %v1291
      %v1293 = vmul.f32 %v1288, %v1292
      %vm1294 = vweird.f32 %v693
      %vm1295 = vweird.f32 %v1288
      %vm1296 = vmor %vm1294, %vm1295
      %v1297 = vsel %vm1296, %v1288, %v1293
      %v1298 = vrsqrt.pop %v694
      %v1299 = vmul.f32 %v1298, %v694
      %v1300 = vmul.f32 %v1299, %v1298
      %v1301 = vmul.f32 0.5, %v1300
      %v1302 = vsub.f32 1.5, %v1301
      %v1303 = vmul.f32 %v1298, %v1302
      %vm1304 = vweird.f32 %v694
      %vm1305 = vweird.f32 %v1298
      %vm1306 = vmor %vm1304, %vm1305
      %v1307 = vsel %vm1306, %v1298, %v1303
      %v1308 = vrsqrt.pop %v695
      %v1309 = vmul.f32 %v1308, %v695
      %v1310 = vmul.f32 %v1309, %v1308
      %v1311 = vmul.f32 0.5, %v1310
      %v1312 = vsub.f32 1.5, %v1311
      %v1313 = vmul.f32 %v1308, %v1312
      %vm1314 = vweird.f32 %v695
      %vm1315 = vweird.f32 %v1308
      %vm1316 = vmor %vm1314, %vm1315
      %v1317 = vsel %vm1316, %v1308, %v1313
      %v1318 = vrsqrt.pop %v696
      %v1319 = vmul.f32 %v1318, %v696
      %v1320 = vmul.f32 %v1319, %v1318
      %v1321 = vmul.f32 0.5, %v1320
      %v1322 = vsub.f32 1.5, %v1321
      %v1323 = vmul.f32 %v1318, %v1322
      %vm1324 = vweird.f32 %v696
      %vm1325 = vweird.f32 %v1318
      %vm1326 = vmor %vm1324, %vm1325
      %v1327 = vsel %vm1326, %v1318, %v1323
      %v1328 = vrsqrt.pop %v697
      %v1329 = vmul.f32 %v1328, %v697
      %v1330 = vmul.f32 %v1329, %v1328
      %v1331 = vmul.f32 0.5, %v1330
      %v1332 = vsub.f32 1.5, %v1331
      %v1333 = vmul.f32 %v1328, %v1332
      %vm1334 = vweird.f32 %v697
      %vm1335 = vweird.f32 %v1328
      %vm1336 = vmor %vm1334, %vm1335
      %v1337 = vsel %vm1336, %v1328, %v1333
      %v1338 = vmul.f32 %v314, %v707
      %v1339 = vmul.f32 %v315, %v717
      %v1340 = vmul.f32 %v316, %v727
      %v1341 = vmul.f32 %v317, %v737
      %v1342 = vmul.f32 %v318, %v747
      %v1343 = vmul.f32 %v319, %v757
      %v1344 = vmul.f32 %v320, %v767
      %v1345 = vmul.f32 %v321, %v777
      %v1346 = vmul.f32 %v322, %v787
      %v1347 = vmul.f32 %v323, %v797
      %v1348 = vmul.f32 %v324, %v807
      %v1349 = vmul.f32 %v325, %v817
      %v1350 = vmul.f32 %v326, %v827
      %v1351 = vmul.f32 %v327, %v837
      %v1352 = vmul.f32 %v328, %v847
      %v1353 = vmul.f32 %v329, %v857
      %v1354 = vmul.f32 %v330, %v867
      %v1355 = vmul.f32 %v331, %v877
      %v1356 = vmul.f32 %v332, %v887
      %v1357 = vmul.f32 %v333, %v897
      %v1358 = vmul.f32 %v334, %v907
      %v1359 = vmul.f32 %v335, %v917
      %v1360 = vmul.f32 %v336, %v927
      %v1361 = vmul.f32 %v337, %v937
      %v1362 = vmul.f32 %v338, %v947
      %v1363 = vmul.f32 %v339, %v957
      %v1364 = vmul.f32 %v340, %v967
      %v1365 = vmul.f32 %v341, %v977
      %v1366 = vmul.f32 %v342, %v987
      %v1367 = vmul.f32 %v343, %v997
      %v1368 = vmul.f32 %v344, %v1007
      %v1369 = vmul.f32 %v345, %v1017
      %v1370 = vmul.f32 %v346, %v1027
      %v1371 = vmul.f32 %v347, %v1037
      %v1372 = vmul.f32 %v348, %v1047
      %v1373 = vmul.f32 %v349, %v1057
      %v1374 = vmul.f32 %v350, %v1067
      %v1375 = vmul.f32 %v351, %v1077
      %v1376 = vmul.f32 %v352, %v1087
      %v1377 = vmul.f32 %v353, %v1097
      %v1378 = vmul.f32 %v354, %v1107
      %v1379 = vmul.f32 %v355, %v1117
      %v1380 = vmul.f32 %v356, %v1127
      %v1381 = vmul.f32 %v357, %v1137
      %v1382 = vmul.f32 %v358, %v1147
      %v1383 = vmul.f32 %v359, %v1157
      %v1384 = vmul.f32 %v360, %v1167
      %v1385 = vmul.f32 %v361, %v1177
      %v1386 = vmul.f32 %v362, %v1187
      %v1387 = vmul.f32 %v363, %v1197
      %v1388 = vmul.f32 %v364, %v1207
      %v1389 = vmul.f32 %v365, %v1217
      %v1390 = vmul.f32 %v366, %v1227
      %v1391 = vmul.f32 %v367, %v1237
      %v1392 = vmul.f32 %v368, %v1247
      %v1393 = vmul.f32 %v369, %v1257
      %v1394 = vmul.f32 %v370, %v1267
      %v1395 = vmul.f32 %v371, %v1277
      %v1396 = vmul.f32 %v372, %v1287
      %v1397 = vmul.f32 %v373, %v1297
      %v1398 = vmul.f32 %v374, %v1307
      %v1399 = vmul.f32 %v375, %v1317
      %v1400 = vmul.f32 %v376, %v1327
      %v1401 = vmul.f32 %v377, %v1337
      %v1402 = vpack.c.bf16 %v1338, %v1338
      %v1403 = vpack.c.bf16 %v1339, %v1339
      %v1404 = vpack.c.bf16 %v1340, %v1340
      %v1405 = vpack.c.bf16 %v1341, %v1341
      %v1406 = vpack.c.bf16 %v1342, %v1342
      %v1407 = vpack.c.bf16 %v1343, %v1343
      %v1408 = vpack.c.bf16 %v1344, %v1344
      %v1409 = vpack.c.bf16 %v1345, %v1345
      %v1410 = vpack.c.bf16 %v1346, %v1346
      %v1411 = vpack.c.bf16 %v1347, %v1347
      %v1412 = vpack.c.bf16 %v1348, %v1348
      %v1413 = vpack.c.bf16 %v1349, %v1349
      %v1414 = vpack.c.bf16 %v1350, %v1350
      %v1415 = vpack.c.bf16 %v1351, %v1351
      %v1416 = vpack.c.bf16 %v1352, %v1352
      %v1417 = vpack.c.bf16 %v1353, %v1353
      %v1418 = vpack.c.bf16 %v1354, %v1354
      %v1419 = vpack.c.bf16 %v1355, %v1355
      %v1420 = vpack.c.bf16 %v1356, %v1356
      %v1421 = vpack.c.bf16 %v1357, %v1357
      %v1422 = vpack.c.bf16 %v1358, %v1358
      %v1423 = vpack.c.bf16 %v1359, %v1359
      %v1424 = vpack.c.bf16 %v1360, %v1360
      %v1425 = vpack.c.bf16 %v1361, %v1361
      %v1426 = vpack.c.bf16 %v1362, %v1362
      %v1427 = vpack.c.bf16 %v1363, %v1363
      %v1428 = vpack.c.bf16 %v1364, %v1364
      %v1429 = vpack.c.bf16 %v1365, %v1365
      %v1430 = vpack.c.bf16 %v1366, %v1366
      %v1431 = vpack.c.bf16 %v1367, %v1367
      %v1432 = vpack.c.bf16 %v1368, %v1368
      %v1433 = vpack.c.bf16 %v1369, %v1369
      %v1434 = vpack.c.bf16 %v1370, %v1370
      %v1435 = vpack.c.bf16 %v1371, %v1371
      %v1436 = vpack.c.bf16 %v1372, %v1372
      %v1437 = vpack.c.bf16 %v1373, %v1373
      %v1438 = vpack.c.bf16 %v1374, %v1374
      %v1439 = vpack.c.bf16 %v1375, %v1375
      %v1440 = vpack.c.bf16 %v1376, %v1376
      %v1441 = vpack.c.bf16 %v1377, %v1377
      %v1442 = vpack.c.bf16 %v1378, %v1378
      %v1443 = vpack.c.bf16 %v1379, %v1379
      %v1444 = vpack.c.bf16 %v1380, %v1380
      %v1445 = vpack.c.bf16 %v1381, %v1381
      %v1446 = vpack.c.bf16 %v1382, %v1382
      %v1447 = vpack.c.bf16 %v1383, %v1383
      %v1448 = vpack.c.bf16 %v1384, %v1384
      %v1449 = vpack.c.bf16 %v1385, %v1385
      %v1450 = vpack.c.bf16 %v1386, %v1386
      %v1451 = vpack.c.bf16 %v1387, %v1387
      %v1452 = vpack.c.bf16 %v1388, %v1388
      %v1453 = vpack.c.bf16 %v1389, %v1389
      %v1454 = vpack.c.bf16 %v1390, %v1390
      %v1455 = vpack.c.bf16 %v1391, %v1391
      %v1456 = vpack.c.bf16 %v1392, %v1392
      %v1457 = vpack.c.bf16 %v1393, %v1393
      %v1458 = vpack.c.bf16 %v1394, %v1394
      %v1459 = vpack.c.bf16 %v1395, %v1395
      %v1460 = vpack.c.bf16 %v1396, %v1396
      %v1461 = vpack.c.bf16 %v1397, %v1397
      %v1462 = vpack.c.bf16 %v1398, %v1398
      %v1463 = vpack.c.bf16 %v1399, %v1399
      %v1464 = vpack.c.bf16 %v1400, %v1400
      %v1465 = vpack.c.bf16 %v1401, %v1401
      %1466 = vst [vmem:[#allocation2] sm:$0xf] %v1402
      %1467 = vst [vmem:[#allocation2 + $0x4] sm:$0xf] %v1403
      %1468 = vst [vmem:[#allocation2 + $0x8] sm:$0xf] %v1404
      %1469 = vst [vmem:[#allocation2 + $0xc] sm:$0xf] %v1405
      %1470 = vst [vmem:[#allocation2 + $0x10] sm:$0xf] %v1406
      %1471 = vst [vmem:[#allocation2 + $0x14] sm:$0xf] %v1407
      %1472 = vst [vmem:[#allocation2 + $0x18] sm:$0xf] %v1408
      %1473 = vst [vmem:[#allocation2 + $0x1c] sm:$0xf] %v1409
      %1474 = vst [vmem:[#allocation2 + $0x20] sm:$0xf] %v1410
      %1475 = vst [vmem:[#allocation2 + $0x24] sm:$0xf] %v1411
      %1476 = vst [vmem:[#allocation2 + $0x28] sm:$0xf] %v1412
      %1477 = vst [vmem:[#allocation2 + $0x2c] sm:$0xf] %v1413
      %1478 = vst [vmem:[#allocation2 + $0x30] sm:$0xf] %v1414
      %1479 = vst [vmem:[#allocation2 + $0x34] sm:$0xf] %v1415
      %1480 = vst [vmem:[#allocation2 + $0x38] sm:$0xf] %v1416
      %1481 = vst [vmem:[#allocation2 + $0x3c] sm:$0xf] %v1417
      %1482 = vst [vmem:[#allocation2 + $0x40] sm:$0xf] %v1418
      %1483 = vst [vmem:[#allocation2 + $0x44] sm:$0xf] %v1419
      %1484 = vst [vmem:[#allocation2 + $0x48] sm:$0xf] %v1420
      %1485 = vst [vmem:[#allocation2 + $0x4c] sm:$0xf] %v1421
      %1486 = vst [vmem:[#allocation2 + $0x50] sm:$0xf] %v1422
      %1487 = vst [vmem:[#allocation2 + $0x54] sm:$0xf] %v1423
      %1488 = vst [vmem:[#allocation2 + $0x58] sm:$0xf] %v1424
      %1489 = vst [vmem:[#allocation2 + $0x5c] sm:$0xf] %v1425
      %1490 = vst [vmem:[#allocation2 + $0x60] sm:$0xf] %v1426
      %1491 = vst [vmem:[#allocation2 + $0x64] sm:$0xf] %v1427
      %1492 = vst [vmem:[#allocation2 + $0x68] sm:$0xf] %v1428
      %1493 = vst [vmem:[#allocation2 + $0x6c] sm:$0xf] %v1429
      %1494 = vst [vmem:[#allocation2 + $0x70] sm:$0xf] %v1430
      %1495 = vst [vmem:[#allocation2 + $0x74] sm:$0xf] %v1431
      %1496 = vst [vmem:[#allocation2 + $0x78] sm:$0xf] %v1432
      %1497 = vst [vmem:[#allocation2 + $0x7c] sm:$0xf] %v1433
      %1498 = vst [vmem:[#allocation2 + $0x80] sm:$0xf] %v1434
      %1499 = vst [vmem:[#allocation2 + $0x84] sm:$0xf] %v1435
      %1500 = vst [vmem:[#allocation2 + $0x88] sm:$0xf] %v1436
      %1501 = vst [vmem:[#allocation2 + $0x8c] sm:$0xf] %v1437
      %1502 = vst [vmem:[#allocation2 + $0x90] sm:$0xf] %v1438
      %1503 = vst [vmem:[#allocation2 + $0x94] sm:$0xf] %v1439
      %1504 = vst [vmem:[#allocation2 + $0x98] sm:$0xf] %v1440
      %1505 = vst [vmem:[#allocation2 + $0x9c] sm:$0xf] %v1441
      %1506 = vst [vmem:[#allocation2 + $0xa0] sm:$0xf] %v1442
      %1507 = vst [vmem:[#allocation2 + $0xa4] sm:$0xf] %v1443
      %1508 = vst [vmem:[#allocation2 + $0xa8] sm:$0xf] %v1444
      %1509 = vst [vmem:[#allocation2 + $0xac] sm:$0xf] %v1445
      %1510 = vst [vmem:[#allocation2 + $0xb0] sm:$0xf] %v1446
      %1511 = vst [vmem:[#allocation2 + $0xb4] sm:$0xf] %v1447
      %1512 = vst [vmem:[#allocation2 + $0xb8] sm:$0xf] %v1448
      %1513 = vst [vmem:[#allocation2 + $0xbc] sm:$0xf] %v1449
      %1514 = vst [vmem:[#allocation2 + $0xc0] sm:$0xf] %v1450
      %1515 = vst [vmem:[#allocation2 + $0xc4] sm:$0xf] %v1451
      %1516 = vst [vmem:[#allocation2 + $0xc8] sm:$0xf] %v1452
      %1517 = vst [vmem:[#allocation2 + $0xcc] sm:$0xf] %v1453
      %1518 = vst [vmem:[#allocation2 + $0xd0] sm:$0xf] %v1454
      %1519 = vst [vmem:[#allocation2 + $0xd4] sm:$0xf] %v1455
      %1520 = vst [vmem:[#allocation2 + $0xd8] sm:$0xf] %v1456
      %1521 = vst [vmem:[#allocation2 + $0xdc] sm:$0xf] %v1457
      %1522 = vst [vmem:[#allocation2 + $0xe0] sm:$0xf] %v1458
      %1523 = vst [vmem:[#allocation2 + $0xe4] sm:$0xf] %v1459
      %1524 = vst [vmem:[#allocation2 + $0xe8] sm:$0xf] %v1460
      %1525 = vst [vmem:[#allocation2 + $0xec] sm:$0xf] %v1461
      %1526 = vst [vmem:[#allocation2 + $0xf0] sm:$0xf] %v1462
      %1527 = vst [vmem:[#allocation2 + $0xf4] sm:$0xf] %v1463
      %1528 = vst [vmem:[#allocation2 + $0xf8] sm:$0xf] %v1464
      %1529 = vst [vmem:[#allocation2 + $0xfc] sm:$0xf] %v1465
    $region25: #{tpu_custom_call.1} parent=1 // pred_fallthru
      _
    %v1530 = vld [vmem:[#allocation2] sm:$0xf]
    %v1531 = vld [vmem:[#allocation2 + $0x4] sm:$0xf]
    %v1532 = vld [vmem:[#allocation2 + $0x8] sm:$0xf]
    %v1533 = vld [vmem:[#allocation2 + $0xc] sm:$0xf]
    %v1534 = vld [vmem:[#allocation2 + $0x10] sm:$0xf]
    %v1535 = vld [vmem:[#allocation2 + $0x14] sm:$0xf]
    %v1536 = vld [vmem:[#allocation2 + $0x18] sm:$0xf]
    %v1537 = vld [vmem:[#allocation2 + $0x1c] sm:$0xf]
    %v1538 = vld [vmem:[#allocation2 + $0x20] sm:$0xf]
    %v1539 = vld [vmem:[#allocation2 + $0x24] sm:$0xf]
    %v1540 = vld [vmem:[#allocation2 + $0x28] sm:$0xf]
    %v1541 = vld [vmem:[#allocation2 + $0x2c] sm:$0xf]
    %v1542 = vld [vmem:[#allocation2 + $0x30] sm:$0xf]
    %v1543 = vld [vmem:[#allocation2 + $0x34] sm:$0xf]
    %v1544 = vld [vmem:[#allocation2 + $0x38] sm:$0xf]
    %v1545 = vld [vmem:[#allocation2 + $0x3c] sm:$0xf]
    %v1546 = vld [vmem:[#allocation2 + $0x40] sm:$0xf]
    %v1547 = vld [vmem:[#allocation2 + $0x44] sm:$0xf]
    %v1548 = vld [vmem:[#allocation2 + $0x48] sm:$0xf]
    %v1549 = vld [vmem:[#allocation2 + $0x4c] sm:$0xf]
    %v1550 = vld [vmem:[#allocation2 + $0x50] sm:$0xf]
    %v1551 = vld [vmem:[#allocation2 + $0x54] sm:$0xf]
    %v1552 = vld [vmem:[#allocation2 + $0x58] sm:$0xf]
    %v1553 = vld [vmem:[#allocation2 + $0x5c] sm:$0xf]
    %v1554 = vld [vmem:[#allocation2 + $0x60] sm:$0xf]
    %v1555 = vld [vmem:[#allocation2 + $0x64] sm:$0xf]
    %v1556 = vld [vmem:[#allocation2 + $0x68] sm:$0xf]
    %v1557 = vld [vmem:[#allocation2 + $0x6c] sm:$0xf]
    %v1558 = vld [vmem:[#allocation2 + $0x70] sm:$0xf]
    %v1559 = vld [vmem:[#allocation2 + $0x74] sm:$0xf]
    %v1560 = vld [vmem:[#allocation2 + $0x78] sm:$0xf]
    %v1561 = vld [vmem:[#allocation2 + $0x7c] sm:$0xf]
    %v1562 = vld [vmem:[#allocation2 + $0x80] sm:$0xf]
    %v1563 = vld [vmem:[#allocation2 + $0x84] sm:$0xf]
    %v1564 = vld [vmem:[#allocation2 + $0x88] sm:$0xf]
    %v1565 = vld [vmem:[#allocation2 + $0x8c] sm:$0xf]
    %v1566 = vld [vmem:[#allocation2 + $0x90] sm:$0xf]
    %v1567 = vld [vmem:[#allocation2 + $0x94] sm:$0xf]
    %v1568 = vld [vmem:[#allocation2 + $0x98] sm:$0xf]
    %v1569 = vld [vmem:[#allocation2 + $0x9c] sm:$0xf]
    %v1570 = vld [vmem:[#allocation2 + $0xa0] sm:$0xf]
    %v1571 = vld [vmem:[#allocation2 + $0xa4] sm:$0xf]
    %v1572 = vld [vmem:[#allocation2 + $0xa8] sm:$0xf]
    %v1573 = vld [vmem:[#allocation2 + $0xac] sm:$0xf]
    %v1574 = vld [vmem:[#allocation2 + $0xb0] sm:$0xf]
    %v1575 = vld [vmem:[#allocation2 + $0xb4] sm:$0xf]
    %v1576 = vld [vmem:[#allocation2 + $0xb8] sm:$0xf]
    %v1577 = vld [vmem:[#allocation2 + $0xbc] sm:$0xf]
    %v1578 = vld [vmem:[#allocation2 + $0xc0] sm:$0xf]
    %v1579 = vld [vmem:[#allocation2 + $0xc4] sm:$0xf]
    %v1580 = vld [vmem:[#allocation2 + $0xc8] sm:$0xf]
    %v1581 = vld [vmem:[#allocation2 + $0xcc] sm:$0xf]
    %v1582 = vld [vmem:[#allocation2 + $0xd0] sm:$0xf]
    %v1583 = vld [vmem:[#allocation2 + $0xd4] sm:$0xf]
    %v1584 = vld [vmem:[#allocation2 + $0xd8] sm:$0xf]
    %v1585 = vld [vmem:[#allocation2 + $0xdc] sm:$0xf]
    %v1586 = vld [vmem:[#allocation2 + $0xe0] sm:$0xf]
    %v1587 = vld [vmem:[#allocation2 + $0xe4] sm:$0xf]
    %v1588 = vld [vmem:[#allocation2 + $0xe8] sm:$0xf]
    %v1589 = vld [vmem:[#allocation2 + $0xec] sm:$0xf]
    %v1590 = vld [vmem:[#allocation2 + $0xf0] sm:$0xf]
    %v1591 = vld [vmem:[#allocation2 + $0xf4] sm:$0xf]
    %v1592 = vld [vmem:[#allocation2 + $0xf8] sm:$0xf]
    %v1593 = vld [vmem:[#allocation2 + $0xfc] sm:$0xf]
    %v1594 = vld [vmem:[#allocation6] sm:$0xf]
    %v1595 = vld [vmem:[#allocation6 + $0x4] sm:$0xf]
    %v1596 = vld [vmem:[#allocation6 + $0x8] sm:$0xf]
    %v1597 = vld [vmem:[#allocation6 + $0xc] sm:$0xf]
    %v1598 = vld [vmem:[#allocation6 + $0x10] sm:$0xf]
    %v1599 = vld [vmem:[#allocation6 + $0x14] sm:$0xf]
    %v1600 = vld [vmem:[#allocation6 + $0x18] sm:$0xf]
    %v1601 = vld [vmem:[#allocation6 + $0x1c] sm:$0xf]
    %v1602 = vld [vmem:[#allocation6 + $0x20] sm:$0xf]
    %v1603 = vld [vmem:[#allocation6 + $0x24] sm:$0xf]
    %v1604 = vld [vmem:[#allocation6 + $0x28] sm:$0xf]
    %v1605 = vld [vmem:[#allocation6 + $0x2c] sm:$0xf]
    %v1606 = vld [vmem:[#allocation6 + $0x30] sm:$0xf]
    %v1607 = vld [vmem:[#allocation6 + $0x34] sm:$0xf]
    %v1608 = vld [vmem:[#allocation6 + $0x38] sm:$0xf]
    %v1609 = vld [vmem:[#allocation6 + $0x3c] sm:$0xf]
    %v1610 = vld [vmem:[%s2] sm:$0x1]
    %v1612 = vperm.slane %v1610, 0
    %v1678 = vunpack.c.l.b16 %v1530
    %v1679 = vunpack.c.l.b16 %v1531
    %v1680 = vunpack.c.l.b16 %v1532
    %v1681 = vunpack.c.l.b16 %v1533
    %v1682 = vunpack.c.l.b16 %v1534
    %v1683 = vunpack.c.l.b16 %v1535
    %v1684 = vunpack.c.l.b16 %v1536
    %v1685 = vunpack.c.l.b16 %v1537
    %v1686 = vunpack.c.l.b16 %v1538
    %v1687 = vunpack.c.l.b16 %v1539
    %v1688 = vunpack.c.l.b16 %v1540
    %v1689 = vunpack.c.l.b16 %v1541
    %v1690 = vunpack.c.l.b16 %v1542
    %v1691 = vunpack.c.l.b16 %v1543
    %v1692 = vunpack.c.l.b16 %v1544
    %v1693 = vunpack.c.l.b16 %v1545
    %v1694 = vunpack.c.l.b16 %v1546
    %v1695 = vunpack.c.l.b16 %v1547
    %v1696 = vunpack.c.l.b16 %v1548
    %v1697 = vunpack.c.l.b16 %v1549
    %v1698 = vunpack.c.l.b16 %v1550
    %v1699 = vunpack.c.l.b16 %v1551
    %v1700 = vunpack.c.l.b16 %v1552
    %v1701 = vunpack.c.l.b16 %v1553
    %v1702 = vunpack.c.l.b16 %v1554
    %v1703 = vunpack.c.l.b16 %v1555
    %v1704 = vunpack.c.l.b16 %v1556
    %v1705 = vunpack.c.l.b16 %v1557
    %v1706 = vunpack.c.l.b16 %v1558
    %v1707 = vunpack.c.l.b16 %v1559
    %v1708 = vunpack.c.l.b16 %v1560
    %v1709 = vunpack.c.l.b16 %v1561
    %v1710 = vunpack.c.l.b16 %v1562
    %v1711 = vunpack.c.l.b16 %v1563
    %v1712 = vunpack.c.l.b16 %v1564
    %v1713 = vunpack.c.l.b16 %v1565
    %v1714 = vunpack.c.l.b16 %v1566
    %v1715 = vunpack.c.l.b16 %v1567
    %v1716 = vunpack.c.l.b16 %v1568
    %v1717 = vunpack.c.l.b16 %v1569
    %v1718 = vunpack.c.l.b16 %v1570
    %v1719 = vunpack.c.l.b16 %v1571
    %v1720 = vunpack.c.l.b16 %v1572
    %v1721 = vunpack.c.l.b16 %v1573
    %v1722 = vunpack.c.l.b16 %v1574
    %v1723 = vunpack.c.l.b16 %v1575
    %v1724 = vunpack.c.l.b16 %v1576
    %v1725 = vunpack.c.l.b16 %v1577
    %v1726 = vunpack.c.l.b16 %v1578
    %v1727 = vunpack.c.l.b16 %v1579
    %v1728 = vunpack.c.l.b16 %v1580
    %v1729 = vunpack.c.l.b16 %v1581
    %v1730 = vunpack.c.l.b16 %v1582
    %v1731 = vunpack.c.l.b16 %v1583
    %v1732 = vunpack.c.l.b16 %v1584
    %v1733 = vunpack.c.l.b16 %v1585
    %v1734 = vunpack.c.l.b16 %v1586
    %v1735 = vunpack.c.l.b16 %v1587
    %v1736 = vunpack.c.l.b16 %v1588
    %v1737 = vunpack.c.l.b16 %v1589
    %v1738 = vunpack.c.l.b16 %v1590
    %v1739 = vunpack.c.l.b16 %v1591
    %v1740 = vunpack.c.l.b16 %v1592
    %v1741 = vunpack.c.l.b16 %v1593
    %v1742 = vpack.c.b16 %v1679, %v1678
    %v1743 = vpack.c.b16 %v1681, %v1680
    %v1744 = vpack.c.b16 %v1683, %v1682
    %v1745 = vpack.c.b16 %v1685, %v1684
    %v1746 = vpack.c.b16 %v1687, %v1686
    %v1747 = vpack.c.b16 %v1689, %v1688
    %v1748 = vpack.c.b16 %v1691, %v1690
    %v1749 = vpack.c.b16 %v1693, %v1692
    %v1750 = vpack.c.b16 %v1695, %v1694
    %v1751 = vpack.c.b16 %v1697, %v1696
    %v1752 = vpack.c.b16 %v1699, %v1698
    %v1753 = vpack.c.b16 %v1701, %v1700
    %v1754 = vpack.c.b16 %v1703, %v1702
    %v1755 = vpack.c.b16 %v1705, %v1704
    %v1756 = vpack.c.b16 %v1707, %v1706
    %v1757 = vpack.c.b16 %v1709, %v1708
    %v1758 = vpack.c.b16 %v1711, %v1710
    %v1759 = vpack.c.b16 %v1713, %v1712
    %v1760 = vpack.c.b16 %v1715, %v1714
    %v1761 = vpack.c.b16 %v1717, %v1716
    %v1762 = vpack.c.b16 %v1719, %v1718
    %v1763 = vpack.c.b16 %v1721, %v1720
    %v1764 = vpack.c.b16 %v1723, %v1722
    %v1765 = vpack.c.b16 %v1725, %v1724
    %v1766 = vpack.c.b16 %v1727, %v1726
    %v1767 = vpack.c.b16 %v1729, %v1728
    %v1768 = vpack.c.b16 %v1731, %v1730
    %v1769 = vpack.c.b16 %v1733, %v1732
    %v1770 = vpack.c.b16 %v1735, %v1734
    %v1771 = vpack.c.b16 %v1737, %v1736
    %v1772 = vpack.c.b16 %v1739, %v1738
    %v1773 = vpack.c.b16 %v1741, %v1740
    %v1822 = vunpack.c.l.b16 %v1594
    %v1823 = vunpack.c.l.b16 %v1595
    %v1824 = vunpack.c.l.b16 %v1596
    %v1825 = vunpack.c.l.b16 %v1597
    %v1826 = vunpack.c.l.b16 %v1598
    %v1827 = vunpack.c.l.b16 %v1599
    %v1828 = vunpack.c.l.b16 %v1600
    %v1829 = vunpack.c.l.b16 %v1601
    %v1830 = vunpack.c.l.b16 %v1602
    %v1831 = vunpack.c.l.b16 %v1603
    %v1832 = vunpack.c.l.b16 %v1604
    %v1833 = vunpack.c.l.b16 %v1605
    %v1834 = vunpack.c.l.b16 %v1606
    %v1835 = vunpack.c.l.b16 %v1607
    %v1836 = vunpack.c.l.b16 %v1608
    %v1837 = vunpack.c.l.b16 %v1609
    %v1838 = vpack.c.b16 %v1823, %v1822
    %v1839 = vpack.c.b16 %v1825, %v1824
    %v1840 = vpack.c.b16 %v1827, %v1826
    %v1841 = vpack.c.b16 %v1829, %v1828
    %v1842 = vpack.c.b16 %v1831, %v1830
    %v1843 = vpack.c.b16 %v1833, %v1832
    %v1844 = vpack.c.b16 %v1835, %v1834
    %v1845 = vpack.c.b16 %v1837, %v1836
    %1854 = vmatpush.bf16.msra.mxu0 %v1845
    %1855 = vmatpush.bf16.msra.mxu0 %v1844
    %1856 = vmatpush.bf16.msra.mxu0 %v1843
    %1857 = vmatpush.bf16.msra.mxu0 %v1842
    %1858 = vmatpush.bf16.msra.mxu0 %v1841
    %1859 = vmatpush.bf16.msra.mxu0 %v1840
    %1860 = vmatpush.bf16.msra.mxu0 %v1839
    %1861 = vmatpush.bf16.msra.mxu0 %v1838
    %1862 = vmatmul.bf16.gmra.mxu0 %v1742
    %v1863 = vpop.f32.mrf.mxu0
    %v1864 = vadd.f32 %v1612, %v1863
    %v1865 = vpop.f32.mrf.mxu0
    %v1866 = vadd.f32 %v1612, %v1865
    %1867 = vmatmul.bf16.gmra.mxu0 %v1743
    %v1868 = vpop.f32.mrf.mxu0
    %v1869 = vadd.f32 %v1612, %v1868
    %v1870 = vpop.f32.mrf.mxu0
    %v1871 = vadd.f32 %v1612, %v1870
    %1872 = vmatmul.bf16.gmra.mxu0 %v1744
    %v1873 = vpop.f32.mrf.mxu0
    %v1874 = vadd.f32 %v1612, %v1873
    %v1875 = vpop.f32.mrf.mxu0
    %v1876 = vadd.f32 %v1612, %v1875
    %1877 = vmatmul.bf16.gmra.mxu0 %v1745
    %v1878 = vpop.f32.mrf.mxu0
    %v1879 = vadd.f32 %v1612, %v1878
    %v1880 = vpop.f32.mrf.mxu0
    %v1881 = vadd.f32 %v1612, %v1880
    %1882 = vmatmul.bf16.gmra.mxu0 %v1746
    %v1883 = vpop.f32.mrf.mxu0
    %v1884 = vadd.f32 %v1612, %v1883
    %v1885 = vpop.f32.mrf.mxu0
    %v1886 = vadd.f32 %v1612, %v1885
    %1887 = vmatmul.bf16.gmra.mxu0 %v1747
    %v1888 = vpop.f32.mrf.mxu0
    %v1889 = vadd.f32 %v1612, %v1888
    %v1890 = vpop.f32.mrf.mxu0
    %v1891 = vadd.f32 %v1612, %v1890
    %1892 = vmatmul.bf16.gmra.mxu0 %v1748
    %v1893 = vpop.f32.mrf.mxu0
    %v1894 = vadd.f32 %v1612, %v1893
    %v1895 = vpop.f32.mrf.mxu0
    %v1896 = vadd.f32 %v1612, %v1895
    %1897 = vmatmul.bf16.gmra.mxu0 %v1749
    %v1898 = vpop.f32.mrf.mxu0
    %v1899 = vadd.f32 %v1612, %v1898
    %v1900 = vpop.f32.mrf.mxu0
    %v1901 = vadd.f32 %v1612, %v1900
    %1902 = vmatmul.bf16.gmra.mxu0 %v1750
    %v1903 = vpop.f32.mrf.mxu0
    %v1904 = vadd.f32 %v1612, %v1903
    %v1905 = vpop.f32.mrf.mxu0
    %v1906 = vadd.f32 %v1612, %v1905
    %1907 = vmatmul.bf16.gmra.mxu0 %v1751
    %v1908 = vpop.f32.mrf.mxu0
    %v1909 = vadd.f32 %v1612, %v1908
    %v1910 = vpop.f32.mrf.mxu0
    %v1911 = vadd.f32 %v1612, %v1910
    %1912 = vmatmul.bf16.gmra.mxu0 %v1752
    %v1913 = vpop.f32.mrf.mxu0
    %v1914 = vadd.f32 %v1612, %v1913
    %v1915 = vpop.f32.mrf.mxu0
    %v1916 = vadd.f32 %v1612, %v1915
    %1917 = vmatmul.bf16.gmra.mxu0 %v1753
    %v1918 = vpop.f32.mrf.mxu0
    %v1919 = vadd.f32 %v1612, %v1918
    %v1920 = vpop.f32.mrf.mxu0
    %v1921 = vadd.f32 %v1612, %v1920
    %1922 = vmatmul.bf16.gmra.mxu0 %v1754
    %v1923 = vpop.f32.mrf.mxu0
    %v1924 = vadd.f32 %v1612, %v1923
    %v1925 = vpop.f32.mrf.mxu0
    %v1926 = vadd.f32 %v1612, %v1925
    %1927 = vmatmul.bf16.gmra.mxu0 %v1755
    %v1928 = vpop.f32.mrf.mxu0
    %v1929 = vadd.f32 %v1612, %v1928
    %v1930 = vpop.f32.mrf.mxu0
    %v1931 = vadd.f32 %v1612, %v1930
    %1932 = vmatmul.bf16.gmra.mxu0 %v1756
    %v1933 = vpop.f32.mrf.mxu0
    %v1934 = vadd.f32 %v1612, %v1933
    %v1935 = vpop.f32.mrf.mxu0
    %v1936 = vadd.f32 %v1612, %v1935
    %1937 = vmatmul.bf16.gmra.mxu0 %v1757
    %v1938 = vpop.f32.mrf.mxu0
    %v1939 = vadd.f32 %v1612, %v1938
    %v1940 = vpop.f32.mrf.mxu0
    %v1941 = vadd.f32 %v1612, %v1940
    %1942 = vmatmul.bf16.gmra.mxu0 %v1758
    %v1943 = vpop.f32.mrf.mxu0
    %v1944 = vadd.f32 %v1612, %v1943
    %v1945 = vpop.f32.mrf.mxu0
    %v1946 = vadd.f32 %v1612, %v1945
    %1947 = vmatmul.bf16.gmra.mxu0 %v1759
    %v1948 = vpop.f32.mrf.mxu0
    %v1949 = vadd.f32 %v1612, %v1948
    %v1950 = vpop.f32.mrf.mxu0
    %v1951 = vadd.f32 %v1612, %v1950
    %1952 = vmatmul.bf16.gmra.mxu0 %v1760
    %v1953 = vpop.f32.mrf.mxu0
    %v1954 = vadd.f32 %v1612, %v1953
    %v1955 = vpop.f32.mrf.mxu0
    %v1956 = vadd.f32 %v1612, %v1955
    %1957 = vmatmul.bf16.gmra.mxu0 %v1761
    %v1958 = vpop.f32.mrf.mxu0
    %v1959 = vadd.f32 %v1612, %v1958
    %v1960 = vpop.f32.mrf.mxu0
    %v1961 = vadd.f32 %v1612, %v1960
    %1962 = vmatmul.bf16.gmra.mxu0 %v1762
    %v1963 = vpop.f32.mrf.mxu0
    %v1964 = vadd.f32 %v1612, %v1963
    %v1965 = vpop.f32.mrf.mxu0
    %v1966 = vadd.f32 %v1612, %v1965
    %1967 = vmatmul.bf16.gmra.mxu0 %v1763
    %v1968 = vpop.f32.mrf.mxu0
    %v1969 = vadd.f32 %v1612, %v1968
    %v1970 = vpop.f32.mrf.mxu0
    %v1971 = vadd.f32 %v1612, %v1970
    %1972 = vmatmul.bf16.gmra.mxu0 %v1764
    %v1973 = vpop.f32.mrf.mxu0
    %v1974 = vadd.f32 %v1612, %v1973
    %v1975 = vpop.f32.mrf.mxu0
    %v1976 = vadd.f32 %v1612, %v1975
    %1977 = vmatmul.bf16.gmra.mxu0 %v1765
    %v1978 = vpop.f32.mrf.mxu0
    %v1979 = vadd.f32 %v1612, %v1978
    %v1980 = vpop.f32.mrf.mxu0
    %v1981 = vadd.f32 %v1612, %v1980
    %1982 = vmatmul.bf16.gmra.mxu0 %v1766
    %v1983 = vpop.f32.mrf.mxu0
    %v1984 = vadd.f32 %v1612, %v1983
    %v1985 = vpop.f32.mrf.mxu0
    %v1986 = vadd.f32 %v1612, %v1985
    %1987 = vmatmul.bf16.gmra.mxu0 %v1767
    %v1988 = vpop.f32.mrf.mxu0
    %v1989 = vadd.f32 %v1612, %v1988
    %v1990 = vpop.f32.mrf.mxu0
    %v1991 = vadd.f32 %v1612, %v1990
    %1992 = vmatmul.bf16.gmra.mxu0 %v1768
    %v1993 = vpop.f32.mrf.mxu0
    %v1994 = vadd.f32 %v1612, %v1993
    %v1995 = vpop.f32.mrf.mxu0
    %v1996 = vadd.f32 %v1612, %v1995
    %1997 = vmatmul.bf16.gmra.mxu0 %v1769
    %v1998 = vpop.f32.mrf.mxu0
    %v1999 = vadd.f32 %v1612, %v1998
    %v2000 = vpop.f32.mrf.mxu0
    %v2001 = vadd.f32 %v1612, %v2000
    %2002 = vmatmul.bf16.gmra.mxu0 %v1770
    %v2003 = vpop.f32.mrf.mxu0
    %v2004 = vadd.f32 %v1612, %v2003
    %v2005 = vpop.f32.mrf.mxu0
    %v2006 = vadd.f32 %v1612, %v2005
    %2007 = vmatmul.bf16.gmra.mxu0 %v1771
    %v2008 = vpop.f32.mrf.mxu0
    %v2009 = vadd.f32 %v1612, %v2008
    %v2010 = vpop.f32.mrf.mxu0
    %v2011 = vadd.f32 %v1612, %v2010
    %2012 = vmatmul.bf16.gmra.mxu0 %v1772
    %v2013 = vpop.f32.mrf.mxu0
    %v2014 = vadd.f32 %v1612, %v2013
    %v2015 = vpop.f32.mrf.mxu0
    %v2016 = vadd.f32 %v1612, %v2015
    %2017 = vmatmul.bf16.gmra.mxu0 %v1773
    %v2018 = vpop.f32.mrf.mxu0
    %v2019 = vadd.f32 %v1612, %v2018
    %v2020 = vpop.f32.mrf.mxu0
    %v2021 = vadd.f32 %v1612, %v2020
    %2022 = vdwg.mxu0
    %2023 = vst [vmem:[#allocation8] sm:$0xff] %v1864
    %2024 = vst [vmem:[#allocation8 + $0x8] sm:$0xff] %v1866
    %2025 = vst [vmem:[#allocation8 + $0x10] sm:$0xff] %v1869
    %2026 = vst [vmem:[#allocation8 + $0x18] sm:$0xff] %v1871
    %2027 = vst [vmem:[#allocation8 + $0x20] sm:$0xff] %v1874
    %2028 = vst [vmem:[#allocation8 + $0x28] sm:$0xff] %v1876
    %2029 = vst [vmem:[#allocation8 + $0x30] sm:$0xff] %v1879
    %2030 = vst [vmem:[#allocation8 + $0x38] sm:$0xff] %v1881
    %2031 = vst [vmem:[#allocation8 + $0x40] sm:$0xff] %v1884
    %2032 = vst [vmem:[#allocation8 + $0x48] sm:$0xff] %v1886
    %2033 = vst [vmem:[#allocation8 + $0x50] sm:$0xff] %v1889
    %2034 = vst [vmem:[#allocation8 + $0x58] sm:$0xff] %v1891
    %2035 = vst [vmem:[#allocation8 + $0x60] sm:$0xff] %v1894
    %2036 = vst [vmem:[#allocation8 + $0x68] sm:$0xff] %v1896
    %2037 = vst [vmem:[#allocation8 + $0x70] sm:$0xff] %v1899
    %2038 = vst [vmem:[#allocation8 + $0x78] sm:$0xff] %v1901
    %2039 = vst [vmem:[#allocation8 + $0x80] sm:$0xff] %v1904
    %2040 = vst [vmem:[#allocation8 + $0x88] sm:$0xff] %v1906
    %2041 = vst [vmem:[#allocation8 + $0x90] sm:$0xff] %v1909
    %2042 = vst [vmem:[#allocation8 + $0x98] sm:$0xff] %v1911
    %2043 = vst [vmem:[#allocation8 + $0xa0] sm:$0xff] %v1914
    %2044 = vst [vmem:[#allocation8 + $0xa8] sm:$0xff] %v1916
    %2045 = vst [vmem:[#allocation8 + $0xb0] sm:$0xff] %v1919
    %2046 = vst [vmem:[#allocation8 + $0xb8] sm:$0xff] %v1921
    %2047 = vst [vmem:[#allocation8 + $0xc0] sm:$0xff] %v1924
    %2048 = vst [vmem:[#allocation8 + $0xc8] sm:$0xff] %v1926
    %2049 = vst [vmem:[#allocation8 + $0xd0] sm:$0xff] %v1929
    %2050 = vst [vmem:[#allocation8 + $0xd8] sm:$0xff] %v1931
    %2051 = vst [vmem:[#allocation8 + $0xe0] sm:$0xff] %v1934
    %2052 = vst [vmem:[#allocation8 + $0xe8] sm:$0xff] %v1936
    %2053 = vst [vmem:[#allocation8 + $0xf0] sm:$0xff] %v1939
    %2054 = vst [vmem:[#allocation8 + $0xf8] sm:$0xff] %v1941
    %2055 = vst [vmem:[#allocation8 + $0x100] sm:$0xff] %v1944
    %2056 = vst [vmem:[#allocation8 + $0x108] sm:$0xff] %v1946
    %2057 = vst [vmem:[#allocation8 + $0x110] sm:$0xff] %v1949
    %2058 = vst [vmem:[#allocation8 + $0x118] sm:$0xff] %v1951
    %2059 = vst [vmem:[#allocation8 + $0x120] sm:$0xff] %v1954
    %2060 = vst [vmem:[#allocation8 + $0x128] sm:$0xff] %v1956
    %2061 = vst [vmem:[#allocation8 + $0x130] sm:$0xff] %v1959
    %2062 = vst [vmem:[#allocation8 + $0x138] sm:$0xff] %v1961
    %2063 = vst [vmem:[#allocation8 + $0x140] sm:$0xff] %v1964
    %2064 = vst [vmem:[#allocation8 + $0x148] sm:$0xff] %v1966
    %2065 = vst [vmem:[#allocation8 + $0x150] sm:$0xff] %v1969
    %2066 = vst [vmem:[#allocation8 + $0x158] sm:$0xff] %v1971
    %2067 = vst [vmem:[#allocation8 + $0x160] sm:$0xff] %v1974
    %2068 = vst [vmem:[#allocation8 + $0x168] sm:$0xff] %v1976
    %2069 = vst [vmem:[#allocation8 + $0x170] sm:$0xff] %v1979
    %2070 = vst [vmem:[#allocation8 + $0x178] sm:$0xff] %v1981
    %2071 = vst [vmem:[#allocation8 + $0x180] sm:$0xff] %v1984
    %2072 = vst [vmem:[#allocation8 + $0x188] sm:$0xff] %v1986
    %2073 = vst [vmem:[#allocation8 + $0x190] sm:$0xff] %v1989
    %2074 = vst [vmem:[#allocation8 + $0x198] sm:$0xff] %v1991
    %2075 = vst [vmem:[#allocation8 + $0x1a0] sm:$0xff] %v1994
    %2076 = vst [vmem:[#allocation8 + $0x1a8] sm:$0xff] %v1996
    %2077 = vst [vmem:[#allocation8 + $0x1b0] sm:$0xff] %v1999
    %2078 = vst [vmem:[#allocation8 + $0x1b8] sm:$0xff] %v2001
    %2079 = vst [vmem:[#allocation8 + $0x1c0] sm:$0xff] %v2004
    %2080 = vst [vmem:[#allocation8 + $0x1c8] sm:$0xff] %v2006
    %2081 = vst [vmem:[#allocation8 + $0x1d0] sm:$0xff] %v2009
    %2082 = vst [vmem:[#allocation8 + $0x1d8] sm:$0xff] %v2011
    %2083 = vst [vmem:[#allocation8 + $0x1e0] sm:$0xff] %v2014
    %2084 = vst [vmem:[#allocation8 + $0x1e8] sm:$0xff] %v2016
    %2085 = vst [vmem:[#allocation8 + $0x1f0] sm:$0xff] %v2019
    %2086 = vst [vmem:[#allocation8 + $0x1f8] sm:$0xff] %v2021
    // Predicated region
    $region26: #{tpu_custom_call.1} parent=1 // pred_check
      _
    $region27: #{tpu_custom_call.1} parent=1 // pred_check_branch
      %2088 = sbr.rel (0) target = $region29
    $region28: #{tpu_custom_call.1} parent=1 // pred_region
      %2090 = vsyncadd [#allocation5], 0
      %s2091 = sshll.u32 [#allocation8], 4
      %s2092 = int_to_ptr.vmem [resolvable:$true] %s2091
      %s2093 = sshll.u32 %s3, 4
      %s2094 = int_to_ptr.hbm [resolvable:$true] %s2093
      %2099 = dma.vmem_to_hbm [thread:$0]  %s2092, 8192, %s2094, [#allocation5], 128, 128, 8
    $region29: #{tpu_custom_call.1} parent=1 // pred_fallthru
      _
    // Predicated region
    $region30: #{tpu_custom_call.1} parent=1 // pred_check
      _
    $region31: #{tpu_custom_call.1} parent=1 // pred_check_branch
      %2101 = sbr.rel (0) target = $region33
    $region32: #{tpu_custom_call.1} parent=1 // pred_region
      %2103 = dma.done [#allocation5], 8192
    $region33: #{tpu_custom_call.1} parent=1 // pred_fallthru
      _
    %2104 = vsyncpa [#allocation4], 1
    %2105 = vsyncpa [#allocation7], 1
    %2106 = vsyncpa [#allocation5], 1

</llo_original>
